<compile_context>
chip_gen: v5e
topology: v5e:2x2
jax: 0.10.0
libtpu: 0.0.40
codegen_flags: <defaults>
</compile_context>

<pallas_src>
import functools
import math

import jax
import jax.numpy as jnp
from jax.experimental import pallas as pl
from jax.experimental.pallas import tpu as pltpu


def _conv3x3_kernel(x_ref, w_ref, b_ref, o_ref, acc_ref, *, W, Mrows, Bblk):
    # x_ref  : (Bblk, R, 3*Cin)   dx-im2col'd, zero-padded rows; R = (H+2)*W
    # w_ref  : (3, 3*Cin, Coutp)  one (K, Coutp) bf16 weight slab per dy tap
    # b_ref  : (1, Coutp)         f32 bias
    # o_ref  : (Bblk, Mrows, Coutp) with Mrows = H*W
    # acc_ref: (Mrows, Coutp)     explicit f32 accumulator scratch
    bias = b_ref[...]
    for bi in range(Bblk):                      # static unroll, Bblk is small
        xb = x_ref.at[bi]                       # (R, K) view, no copy
        # dy = 0, 1, 2: contiguous, sublane-aligned shifted windows (offsets
        # 0, W, 2W are multiples of 8 whenever W % 8 == 0).
        acc_ref[...] = jnp.dot(xb[pl.ds(0, Mrows), :], w_ref[0],
                               preferred_element_type=jnp.float32)
        acc_ref[...] += jnp.dot(xb[pl.ds(W, Mrows), :], w_ref[1],
                                preferred_element_type=jnp.float32)
        acc_ref[...] += jnp.dot(xb[pl.ds(2 * W, Mrows), :], w_ref[2],
                                preferred_element_type=jnp.float32)
        o_ref[bi] = (acc_ref[...] + bias).astype(o_ref.dtype)


def output_proj_pallas(x, weight, bias):
    """OutputProj forward.

    x:      [B, L, C]  with L = H*W (square), C = in_channel
    weight: [Cout, Cin, 3, 3]   (PyTorch Conv2d layout)
    bias:   [Cout]
    returns [B, Cout, H, W]     (same as the PyTorch module)
    """
    B, L, Cin = x.shape
    H = int(math.sqrt(L))
    W = H
    assert H * W == L, "L must be a perfect square"
    Cout = weight.shape[0]
    assert weight.shape == (Cout, Cin, 3, 3)

    LANES = 128
    Coutp = ((Cout + LANES - 1) // LANES) * LANES   # lane-dense output channels
    K = 3 * Cin                                     # contraction after dx-im2col
    Hp = H + 2
    R = Hp * W                                      # rows of the im2col'd image
    Mrows = H * W                                   # output rows per image

    # Zero-pad spatially (k=3, s=1 "same"), then dx-only im2col -> (B, R, K).
    img_p = jnp.pad(x.reshape(B, H, W, Cin), ((0, 0), (1, 1), (1, 1), (0, 0)))
    cols = jnp.concatenate([img_p[:, :, dx:dx + W, :] for dx in range(3)], axis=-1)
    xin = cols.reshape(B, R, K).astype(jnp.bfloat16)

    # Weights: (Cout, Cin, 3, 3) -> (3_dy, K=3*Cin, Coutp) bf16; bias -> (1, Coutp) f32.
    w = jnp.transpose(weight, (2, 3, 1, 0)).reshape(3, K, Cout)
    w = jnp.pad(w, ((0, 0), (0, 0), (0, Coutp - Cout))).astype(jnp.bfloat16)
    b = jnp.pad(bias.reshape(1, Cout), ((0, 0), (0, Coutp - Cout))).astype(jnp.float32)

    # Batch blocking: pack batches when B is small, but keep >= 2 grid steps so
    # both v7x TensorCores are fed; large B gets 1 batch/step to pipeline DMAs.
    if B >= 8:
        Bblk = 1
    else:
        Bblk = max(1, B // 2)
        while B % Bblk:
            Bblk -= 1
    nsteps = B // Bblk

    # Honest VMEM budget: double-buffered input/output tiles, resident weights
    # (counted x2 conservatively), bias, and the f32 accumulator scratch.
    out_itemsize = jnp.dtype(x.dtype).itemsize
    vmem_bytes = (
        2 * Bblk * R * K * 2                        # bf16 input tile, x2 buffers
        + 2 * Bblk * Mrows * Coutp * out_itemsize   # output tile, x2 buffers
        + 2 * 3 * K * Coutp * 2                     # bf16 weights
        + 2 * Coutp * 4                             # f32 bias
        + Mrows * Coutp * 4                         # f32 accumulator scratch
    )
    try:
        vmem_cap = int(pltpu.get_tpu_info().vmem_capacity_bytes)
    except Exception:
        vmem_cap = 64 << 20                         # conservative (v7x-sized) fallback
    vmem_limit = min(max(vmem_bytes + (4 << 20), 16 << 20), (vmem_cap * 85) // 100)

    kernel = functools.partial(_conv3x3_kernel, W=W, Mrows=Mrows, Bblk=Bblk)

    out = pl.pallas_call(
        kernel,
        out_shape=jax.ShapeDtypeStruct((B, Mrows, Coutp), x.dtype),
        grid_spec=pltpu.PrefetchScalarGridSpec(
            num_scalar_prefetch=0,
            grid=(nsteps,),
            in_specs=[
                pl.BlockSpec((Bblk, R, K), lambda i: (i, 0, 0)),      # batch block
                pl.BlockSpec((3, K, Coutp), lambda i: (0, 0, 0)),     # weights (resident)
                pl.BlockSpec((1, Coutp), lambda i: (0, 0)),           # bias
            ],
            out_specs=pl.BlockSpec((Bblk, Mrows, Coutp), lambda i: (i, 0, 0)),
            scratch_shapes=[pltpu.VMEM((Mrows, Coutp), jnp.float32)], # f32 accumulator
        ),
        compiler_params=pltpu.CompilerParams(
            dimension_semantics=("parallel",),
            vmem_limit_bytes=vmem_limit,
        ),
    )(xin, w, b)

    # Strip lane padding; back to NCHW to match the PyTorch module's output.
    out = out[:, :, :Cout].reshape(B, H, W, Cout)
    return jnp.transpose(out, (0, 3, 1, 2))


def init_conv_params(key, cin, cout, k=3, dtype=jnp.float32):
    """Deterministic init mimicking torch.nn.Conv2d defaults."""
    kw, kb = jax.random.split(key)
    fan_in = cin * k * k
    bound_w = math.sqrt(3.0 / fan_in)
    weight = jax.random.uniform(kw, (cout, cin, k, k), dtype, -bound_w, bound_w)
    bound_b = 1.0 / math.sqrt(fan_in)
    bias = jax.random.uniform(kb, (cout,), dtype, -bound_b, bound_b)
    return weight, bias


if __name__ == "__main__":
    # Small shapes consistent with the module defaults:
    # batch=2, in_channel=64, out_channel=3, spatial 16x16 (L=256).
    B = 2
    Cin, Cout = 64, 3
    H = W = 16
    L = H * W

    key = jax.random.PRNGKey(0)
    kx, kp = jax.random.split(key)

    x = jax.random.normal(kx, (B, L, Cin), jnp.float32)
    weight, bias = init_conv_params(kp, Cin, Cout)

    y = jax.block_until_ready(output_proj_pallas(x, weight, bias))
    assert y.shape == (B, Cout, H, W)

    # References: exact PyTorch forward (f32), plus a bf16-operand / f32-accum
    # version that matches the kernel's MXU numerics.
    img_nchw = jnp.transpose(x, (0, 2, 1)).reshape(B, Cin, H, W)
    conv = functools.partial(
        jax.lax.conv_general_dilated,
        window_strides=(1, 1), padding=((1, 1), (1, 1)),
        dimension_numbers=("NCHW", "OIHW", "NCHW"))
    ref_f32 = conv(img_nchw, weight, precision=jax.lax.Precision.HIGHEST)
    ref_f32 = ref_f32 + bias.reshape(1, Cout, 1, 1)
    ref_bf16 = conv(img_nchw.astype(jnp.bfloat16), weight.astype(jnp.bfloat16),
                    preferred_element_type=jnp.float32)
    ref_bf16 = ref_bf16 + bias.reshape(1, Cout, 1, 1)

    assert jnp.allclose(y, ref_bf16, atol=5e-3, rtol=5e-3), "mismatch vs bf16 reference"
    assert jnp.allclose(y, ref_f32, atol=5e-2, rtol=5e-2), "mismatch vs f32 reference"
    print("KERNEL_OK")
</pallas_src>

<mosaic_0001>
module attributes {stable_mosaic.version = 11 : i64} {
  func.func @_conv3x3_kernel(%arg0: i32, %arg1: memref<1x288x192xbf16, #tpu.memory_space<vmem>>, %arg2: memref<3x192x128xbf16, #tpu.memory_space<vmem>>, %arg3: memref<1x128xf32, #tpu.memory_space<vmem>>, %arg4: memref<1x256x128xf32, #tpu.memory_space<vmem>>, %arg5: memref<256x128xf32, #tpu.memory_space<vmem>>) attributes {dimension_semantics = [#tpu.dimension_semantics<parallel>], iteration_bounds = array<i64: 2>, scalar_prefetch = 0 : i64, scratch_operands = 1 : i64, tpu.core_type = #tpu.core_type<tc>, window_params = [{transform_indices = @transform_0, window_bounds = array<i64: 1, 288, 192>}, {pipeline_mode = #tpu.pipeline_mode<synchronous>, transform_indices = @transform_1, window_bounds = array<i64: 3, 192, 128>}, {pipeline_mode = #tpu.pipeline_mode<synchronous>, transform_indices = @transform_2, window_bounds = array<i64: 1, 128>}, {transform_indices = @transform_3, window_bounds = array<i64: 1, 256, 128>}]} {
    %c0 = arith.constant 0 : index
    %c0_0 = arith.constant 0 : index
    %0 = vector.load %arg3[%c0, %c0_0] : memref<1x128xf32, #tpu.memory_space<vmem>>, vector<1x128xf32>
    %c0_i32 = arith.constant 0 : i32
    %c0_i32_1 = arith.constant 0 : i32
    %c0_i32_2 = arith.constant 0 : i32
    %1 = tpu.memref_slice %arg1[%c0_i32, %c0_i32_1, %c0_i32_2] : memref<1x288x192xbf16, #tpu.memory_space<vmem>> -> memref<1x288x192xbf16, #tpu.memory_space<vmem>>
    %2 = tpu.memref_squeeze %1 : memref<1x288x192xbf16, #tpu.memory_space<vmem>> -> memref<288x192xbf16, #tpu.memory_space<vmem>>
    %c0_3 = arith.constant 0 : index
    %c0_4 = arith.constant 0 : index
    %3 = vector.load %2[%c0_3, %c0_4] : memref<288x192xbf16, #tpu.memory_space<vmem>>, vector<256x192xbf16>
    %c0_5 = arith.constant 0 : index
    %c0_6 = arith.constant 0 : index
    %c0_7 = arith.constant 0 : index
    %4 = vector.load %arg2[%c0_5, %c0_6, %c0_7] : memref<3x192x128xbf16, #tpu.memory_space<vmem>>, vector<1x192x128xbf16>
    %5 = vector.shape_cast %4 : vector<1x192x128xbf16> to vector<192x128xbf16>
    %cst = arith.constant dense<0.000000e+00> : vector<256x128xf32>
    %6 = tpu.matmul %3, %5, %cst {dimension_numbers = #tpu.dot_dimension_numbers<[1], [0], [0], [1], [0, 0, 1, 1], [], []>} : vector<256x192xbf16>, vector<192x128xbf16>, vector<256x128xf32> -> vector<256x128xf32>
    %c0_8 = arith.constant 0 : index
    %c0_9 = arith.constant 0 : index
    %7 = vector.load %arg5[%c0_8, %c0_9] : memref<256x128xf32, #tpu.memory_space<vmem>>, vector<256x128xf32>
    tpu.vector_store %arg5[%c0_8, %c0_9], %6 {strides = array<i32>} : memref<256x128xf32, #tpu.memory_space<vmem>>, vector<256x128xf32>,
    %c0_10 = arith.constant 0 : index
    %c0_11 = arith.constant 0 : index
    %8 = vector.load %arg5[%c0_10, %c0_11] : memref<256x128xf32, #tpu.memory_space<vmem>>, vector<256x128xf32>
    %c0_i32_12 = arith.constant 0 : i32
    %c0_i32_13 = arith.constant 0 : i32
    %c0_i32_14 = arith.constant 0 : i32
    %9 = tpu.memref_slice %arg1[%c0_i32_12, %c0_i32_13, %c0_i32_14] : memref<1x288x192xbf16, #tpu.memory_space<vmem>> -> memref<1x288x192xbf16, #tpu.memory_space<vmem>>
    %10 = tpu.memref_squeeze %9 : memref<1x288x192xbf16, #tpu.memory_space<vmem>> -> memref<288x192xbf16, #tpu.memory_space<vmem>>
    %c16 = arith.constant 16 : index
    %c0_15 = arith.constant 0 : index
    %11 = vector.load %10[%c16, %c0_15] : memref<288x192xbf16, #tpu.memory_space<vmem>>, vector<256x192xbf16>
    %c1 = arith.constant 1 : index
    %c0_16 = arith.constant 0 : index
    %c0_17 = arith.constant 0 : index
    %12 = vector.load %arg2[%c1, %c0_16, %c0_17] : memref<3x192x128xbf16, #tpu.memory_space<vmem>>, vector<1x192x128xbf16>
    %13 = vector.shape_cast %12 : vector<1x192x128xbf16> to vector<192x128xbf16>
    %cst_18 = arith.constant dense<0.000000e+00> : vector<256x128xf32>
    %14 = tpu.matmul %11, %13, %cst_18 {dimension_numbers = #tpu.dot_dimension_numbers<[1], [0], [0], [1], [0, 0, 1, 1], [], []>} : vector<256x192xbf16>, vector<192x128xbf16>, vector<256x128xf32> -> vector<256x128xf32>
    %15 = arith.addf %8, %14 : vector<256x128xf32>
    %c0_19 = arith.constant 0 : index
    %c0_20 = arith.constant 0 : index
    %16 = vector.load %arg5[%c0_19, %c0_20] : memref<256x128xf32, #tpu.memory_space<vmem>>, vector<256x128xf32>
    tpu.vector_store %arg5[%c0_19, %c0_20], %15 {strides = array<i32>} : memref<256x128xf32, #tpu.memory_space<vmem>>, vector<256x128xf32>,
    %c0_21 = arith.constant 0 : index
    %c0_22 = arith.constant 0 : index
    %17 = vector.load %arg5[%c0_21, %c0_22] : memref<256x128xf32, #tpu.memory_space<vmem>>, vector<256x128xf32>
    %c0_i32_23 = arith.constant 0 : i32
    %c0_i32_24 = arith.constant 0 : i32
    %c0_i32_25 = arith.constant 0 : i32
    %18 = tpu.memref_slice %arg1[%c0_i32_23, %c0_i32_24, %c0_i32_25] : memref<1x288x192xbf16, #tpu.memory_space<vmem>> -> memref<1x288x192xbf16, #tpu.memory_space<vmem>>
    %19 = tpu.memref_squeeze %18 : memref<1x288x192xbf16, #tpu.memory_space<vmem>> -> memref<288x192xbf16, #tpu.memory_space<vmem>>
    %c32 = arith.constant 32 : index
    %c0_26 = arith.constant 0 : index
    %20 = vector.load %19[%c32, %c0_26] : memref<288x192xbf16, #tpu.memory_space<vmem>>, vector<256x192xbf16>
    %c2 = arith.constant 2 : index
    %c0_27 = arith.constant 0 : index
    %c0_28 = arith.constant 0 : index
    %21 = vector.load %arg2[%c2, %c0_27, %c0_28] : memref<3x192x128xbf16, #tpu.memory_space<vmem>>, vector<1x192x128xbf16>
    %22 = vector.shape_cast %21 : vector<1x192x128xbf16> to vector<192x128xbf16>
    %cst_29 = arith.constant dense<0.000000e+00> : vector<256x128xf32>
    %23 = tpu.matmul %20, %22, %cst_29 {dimension_numbers = #tpu.dot_dimension_numbers<[1], [0], [0], [1], [0, 0, 1, 1], [], []>} : vector<256x192xbf16>, vector<192x128xbf16>, vector<256x128xf32> -> vector<256x128xf32>
    %24 = arith.addf %17, %23 : vector<256x128xf32>
    %c0_30 = arith.constant 0 : index
    %c0_31 = arith.constant 0 : index
    %25 = vector.load %arg5[%c0_30, %c0_31] : memref<256x128xf32, #tpu.memory_space<vmem>>, vector<256x128xf32>
    tpu.vector_store %arg5[%c0_30, %c0_31], %24 {strides = array<i32>} : memref<256x128xf32, #tpu.memory_space<vmem>>, vector<256x128xf32>,
    %c0_32 = arith.constant 0 : index
    %c0_33 = arith.constant 0 : index
    %26 = vector.load %arg5[%c0_32, %c0_33] : memref<256x128xf32, #tpu.memory_space<vmem>>, vector<256x128xf32>
    %27 = vector.broadcast %0 : vector<1x128xf32> to vector<256x128xf32>
    %28 = arith.addf %26, %27 : vector<256x128xf32>
    %c0_34 = arith.constant 0 : index
    %c0_35 = arith.constant 0 : index
    %c0_36 = arith.constant 0 : index
    %29 = vector.load %arg4[%c0_34, %c0_35, %c0_36] : memref<1x256x128xf32, #tpu.memory_space<vmem>>, vector<1x256x128xf32>
    %30 = vector.shape_cast %29 : vector<1x256x128xf32> to vector<256x128xf32>
    %31 = vector.shape_cast %28 : vector<256x128xf32> to vector<1x256x128xf32>
    tpu.vector_store %arg4[%c0_34, %c0_35, %c0_36], %31 {strides = array<i32>} : memref<1x256x128xf32, #tpu.memory_space<vmem>>, vector<1x256x128xf32>,
    return
  }
  func.func @transform_0(%arg0: i32) -> (i32, i32, i32) {
    %c0_i32 = arith.constant 0 : i32
    %c0_i32_0 = arith.constant 0 : i32
    %c0_i32_1 = arith.constant 0 : i32
    return %arg0, %c0_i32, %c0_i32_0 : i32, i32, i32
  }
  func.func @transform_1(%arg0: i32) -> (i32, i32, i32) {
    %c0_i32 = arith.constant 0 : i32
    %c0_i32_0 = arith.constant 0 : i32
    %c0_i32_1 = arith.constant 0 : i32
    %c0_i32_2 = arith.constant 0 : i32
    return %c0_i32, %c0_i32_0, %c0_i32_1 : i32, i32, i32
  }
  func.func @transform_2(%arg0: i32) -> (i32, i32) {
    %c0_i32 = arith.constant 0 : i32
    %c0_i32_0 = arith.constant 0 : i32
    %c0_i32_1 = arith.constant 0 : i32
    return %c0_i32, %c0_i32_0 : i32, i32
  }
  func.func @transform_3(%arg0: i32) -> (i32, i32, i32) {
    %c0_i32 = arith.constant 0 : i32
    %c0_i32_0 = arith.constant 0 : i32
    %c0_i32_1 = arith.constant 0 : i32
    return %arg0, %c0_i32, %c0_i32_0 : i32, i32, i32
  }
}

</mosaic_0001>

<llo_original>
// kernel: tpu_custom_call.1
$region0: #{tpu_custom_call.1}
  #allocation0 [shape = 'u32[]', space=smem, size = 0x4, offset = 0x4, fixed_abs, tag = 'smem constant byte address 0x4 - core index']
  #allocation1 [shape = 'u32[72,128]{1,0:T(1,128)}', space=vmem, size = 0x9000, scoped, tag = 'internal scratch']
  #allocation2 [shape = 'f32[256,128]{1,0:T(8,128)}', space=vmem, size = 0x20000, scoped, tag = 'scratch operand']
  %s0 = inlined_call_operand.hbm [shape: bf16[2,288,192], index: 0, kind: input, shape index: {}]
  %s1 = inlined_call_operand.hbm [shape: bf16[3,192,128], index: 1, kind: input, shape index: {}]
  %s2 = inlined_call_operand.vmem [shape: f32[1,128], index: 2, kind: input, shape index: {}]
  %s3 = inlined_call_operand.hbm [shape: f32[2,256,128], index: 3, kind: output, shape index: {}]
  %s4 = sld [smem:[#allocation0]]
  $region53: #{tpu_custom_call.1} parent=0
    _
  %s6 = ssub.s32 1, %s4
  %s7 = scalar_select 0, %s6, %s4
  $region1: #{tpu_custom_call.1} parent=0
    #allocation3 [shape = 'u8[294912]{0}', space=vmem, size = 0x48000, scoped, tag = 'input window, operand 0']
    #allocation4 [shape = 's32[2]{0}', space=sflag, size = 0x8, scoped, tag = 'scoped memory for tpu_custom_call.1']
    #allocation5 [shape = 's32[2]{0}', space=sflag, size = 0x8, scoped, tag = 'scoped memory for tpu_custom_call.1']
    #allocation6 [shape = 'u8[147456]{0}', space=vmem, size = 0x24000, scoped, tag = 'input window, operand 1, single buffered']
    #allocation7 [shape = 's32[1]{0}', space=sflag, size = 0x4, scoped, tag = 'scoped memory for tpu_custom_call.1']
    #allocation8 [shape = 'u8[262144]{0}', space=vmem, size = 0x40000, scoped, tag = 'output window, operand 0']
    %8 = vsyncpa [#allocation4], 0
    %s9 = scalar_lea.sflag [#allocation4], 1
    %10 = vsyncpa %s9, 0
    %11 = vsyncpa [#allocation7], 0
    %12 = vsyncpa [#allocation5], 0
    %s13 = scalar_lea.sflag [#allocation5], 1
    %14 = vsyncpa %s13, 0
    loop: start=0, step=1, limit=4
    $region2: #{tpu_custom_call.1} parent=1 // loop_pre_header
      _
    $region3: #{tpu_custom_call.1} parent=1 // loop_header
      %s16 = sphi 0, %s20
      %p17 = scmp.ge.s32.totalorder %s16, 4
      %s26 = sphi 0, %s28
      %s29 = sphi 0, %s26
      %s30 = sphi 0, %s29
      %s46 = sphi 0, %s30
      %s50 = sphi 0, %s50
      %s52 = sphi 0, %s50
      %s53 = sphi 0, %s52
      %s67 = sphi 0, %s53
      %s71 = sphi 0, %s71
      %s73 = sphi 0, %s71
      %s74 = sphi 0, %s73
      %s88 = sphi 0, %s74
      %s94 = sphi 0, %s96
      %s97 = sphi 0, %s94
      %s98 = sphi 0, %s97
      %s114 = sphi 0, %s98
    $region4: #{tpu_custom_call.1} parent=1 // loop_header_branch
      %19 = sbr.rel (%p17) target = $region8
    $region5: #{tpu_custom_call.1} parent=1 // loop_body
      %s21 = ssub.s32 %s16, 1
      %s22 = ssub.s32 %s16, 2
      %s23 = sadd.s32 %s16, 1
      %s24 = ssub.s32 %s16, %s23
      %p25 = scmp.eq.s32.totalorder %s24, 0
      %s27 = sadd.s32 %s26, 1
      %s28 = scalar_select %p25, %s26, %s27
      %p31 = pneg %p25
      %p32 = scmp.eq.s32.totalorder %s16, 1
      %p33 = por %p31, %p32
      %p34 = scmp.ne.s32.totalorder %s26, %s29
      %p35 = scmp.eq.s32.totalorder %s16, 0
      %p36 = por %p34, %p35
      %p37 = scmp.ne.s32.totalorder %s26, %s29
      %p38 = scmp.eq.s32.totalorder %s21, 1
      %p39 = por %p37, %p38
      %p40 = scmp.ne.s32.totalorder %s29, %s30
      %p41 = scmp.eq.s32.totalorder %s21, 0
      %p42 = por %p40, %p41
      %p43 = scmp.ne.s32.totalorder %s29, %s30
      %p44 = scmp.eq.s32.totalorder %s22, 1
      %p45 = por %p43, %p44
      %p47 = scmp.ne.s32.totalorder %s30, %s46
      %p48 = scmp.eq.s32.totalorder %s22, 0
      %p49 = por %p47, %p48
      %s51 = sadd.s32 %s50, 1
      %p54 = scmp.eq.s32.totalorder %s16, 1
      %p55 = scmp.ne.s32.totalorder %s50, %s52
      %p56 = scmp.eq.s32.totalorder %s16, 0
      %p57 = por %p55, %p56
      %p58 = scmp.ne.s32.totalorder %s50, %s52
      %p59 = scmp.eq.s32.totalorder %s21, 1
      %p60 = por %p58, %p59
      %p61 = scmp.ne.s32.totalorder %s52, %s53
      %p62 = scmp.eq.s32.totalorder %s21, 0
      %p63 = por %p61, %p62
      %p64 = scmp.ne.s32.totalorder %s52, %s53
      %p65 = scmp.eq.s32.totalorder %s22, 1
      %p66 = por %p64, %p65
      %p68 = scmp.ne.s32.totalorder %s53, %s67
      %p69 = scmp.eq.s32.totalorder %s22, 0
      %p70 = por %p68, %p69
      %s72 = sadd.s32 %s71, 1
      %p75 = scmp.eq.s32.totalorder %s16, 1
      %p76 = scmp.ne.s32.totalorder %s71, %s73
      %p77 = scmp.eq.s32.totalorder %s16, 0
      %p78 = por %p76, %p77
      %p79 = scmp.ne.s32.totalorder %s71, %s73
      %p80 = scmp.eq.s32.totalorder %s21, 1
      %p81 = por %p79, %p80
      %p82 = scmp.ne.s32.totalorder %s73, %s74
      %p83 = scmp.eq.s32.totalorder %s21, 0
      %p84 = por %p82, %p83
      %p85 = scmp.ne.s32.totalorder %s73, %s74
      %p86 = scmp.eq.s32.totalorder %s22, 1
      %p87 = por %p85, %p86
      %p89 = scmp.ne.s32.totalorder %s74, %s88
      %p90 = scmp.eq.s32.totalorder %s22, 0
      %p91 = por %p89, %p90
      %s92 = ssub.s32 %s16, %s23
      %p93 = scmp.eq.s32.totalorder %s92, 0
      %s95 = sadd.s32 %s94, 1
      %s96 = scalar_select %p93, %s94, %s95
      %p99 = pneg %p93
      %p100 = scmp.eq.s32.totalorder %s16, 1
      %p101 = por %p99, %p100
      %p102 = scmp.ne.s32.totalorder %s94, %s97
      %p103 = scmp.eq.s32.totalorder %s16, 0
      %p104 = por %p102, %p103
      %p105 = scmp.ne.s32.totalorder %s94, %s97
      %p106 = scmp.eq.s32.totalorder %s21, 1
      %p107 = por %p105, %p106
      %p108 = scmp.ne.s32.totalorder %s97, %s98
      %p109 = scmp.eq.s32.totalorder %s21, 0
      %p110 = por %p108, %p109
      %p111 = scmp.ne.s32.totalorder %s97, %s98
      %p112 = scmp.eq.s32.totalorder %s22, 1
      %p113 = por %p111, %p112
      %p115 = scmp.ne.s32.totalorder %s98, %s114
      %p116 = scmp.eq.s32.totalorder %s22, 0
      %p117 = por %p115, %p116
      %p118 = scmp.le.s32.totalorder 1, %s16
      %p119 = scmp.lt.s32.totalorder %s16, 3
      %p120 = pnand %p118, %p119
      %p121 = pneg %p120
      // Predicated region
      $region9: #{tpu_custom_call.1} parent=5 // pred_check
        _
      $region10: #{tpu_custom_call.1} parent=5 // pred_check_branch
        %123 = sbr.rel (%p120) target = $region12
      $region11: #{tpu_custom_call.1} parent=5 // pred_region
        %s124 = ssub.s32 %s16, 1
        // Predicated region
        $region13: #{tpu_custom_call.1} parent=11 // pred_check
          %p125 = pneg %p63
        $region14: #{tpu_custom_call.1} parent=11 // pred_check_branch
          %127 = sbr.rel (%p125) target = $region16
        $region15: #{tpu_custom_call.1} parent=11 // pred_region
          %129 = vsyncadd [#allocation7], 0
          %s130 = sshll.u32 %s1, 4
          %s131 = int_to_ptr.hbm [resolvable:$true] %s130
          %s132 = sshll.u32 [#allocation6], 4
          %s133 = int_to_ptr.vmem [resolvable:$true] %s132
          %138 = dma.hbm_to_vmem [thread:$0]  %s131, 4608, %s133, [#allocation7], 64, 64, 4
        $region16: #{tpu_custom_call.1} parent=11 // pred_fallthru
          _
        // Predicated region
        $region17: #{tpu_custom_call.1} parent=11 // pred_check
          %p139 = pneg %p84
        $region18: #{tpu_custom_call.1} parent=11 // pred_check_branch
          %141 = sbr.rel (%p139) target = $region20
        $region19: #{tpu_custom_call.1} parent=11 // pred_region
          _
        $region20: #{tpu_custom_call.1} parent=11 // pred_fallthru
          _
      $region12: #{tpu_custom_call.1} parent=5 // pred_fallthru
        _
      %p142 = scmp.lt.s32.totalorder %s16, 2
      // Predicated region
      $region21: #{tpu_custom_call.1} parent=5 // pred_check
        %p143 = pneg %p142
      $region22: #{tpu_custom_call.1} parent=5 // pred_check_branch
        %145 = sbr.rel (%p143) target = $region24
      $region23: #{tpu_custom_call.1} parent=5 // pred_region
        // Predicated region
        $region25: #{tpu_custom_call.1} parent=23 // pred_check
          %p146 = pneg %p36
        $region26: #{tpu_custom_call.1} parent=23 // pred_check_branch
          %148 = sbr.rel (%p146) target = $region28
        $region27: #{tpu_custom_call.1} parent=23 // pred_region
          %s149 = sand.u32 %s26, 1
          %s150 = scalar_lea.sflag [#allocation4], %s149
          %s151 = sand.u32 %s26, 1
          %s152 = smul.addr %s151, 288
          %s153 = scalar_lea.vmem [#allocation3], %s152
          %155 = vsyncadd %s150, 0
          %s156 = smul.addr %s16, 72
          %s157 = smul.addr %s156, 4
          %s158 = scalar_lea.hbm %s0, %s157
          %s159 = sshll.u32 %s158, 4
          %s160 = int_to_ptr.hbm [resolvable:$true] %s159
          %s161 = sshll.u32 %s153, 4
          %s162 = int_to_ptr.vmem [resolvable:$true] %s161
          %167 = dma.hbm_to_vmem [thread:$0]  %s160, 4608, %s162, %s150, 128, 128, 8
        $region28: #{tpu_custom_call.1} parent=23 // pred_fallthru
          _
      $region24: #{tpu_custom_call.1} parent=5 // pred_fallthru
        _
      %p168 = scmp.le.s32.totalorder 1, %s16
      %p169 = scmp.lt.s32.totalorder %s16, 3
      %p170 = pnand %p168, %p169
      %p171 = pneg %p170
      // Predicated region
      $region29: #{tpu_custom_call.1} parent=5 // pred_check
        _
      $region30: #{tpu_custom_call.1} parent=5 // pred_check_branch
        %173 = sbr.rel (%p170) target = $region32
      $region31: #{tpu_custom_call.1} parent=5 // pred_region
        %s174 = ssub.s32 %s16, 1
        %s175 = sand.u32 %s29, 1
        %s176 = scalar_lea.sflag [#allocation4], %s175
        %s177 = sand.u32 %s29, 1
        %s178 = smul.addr %s177, 288
        %s179 = scalar_lea.vmem [#allocation3], %s178
        // Predicated region
        $region33: #{tpu_custom_call.1} parent=31 // pred_check
          %p180 = pneg %p42
        $region34: #{tpu_custom_call.1} parent=31 // pred_check_branch
          %182 = sbr.rel (%p180) target = $region36
        $region35: #{tpu_custom_call.1} parent=31 // pred_region
          %184 = dma.done %s176, 4608
        $region36: #{tpu_custom_call.1} parent=31 // pred_fallthru
          _
        // Predicated region
        $region37: #{tpu_custom_call.1} parent=31 // pred_check
          %p185 = pneg %p63
        $region38: #{tpu_custom_call.1} parent=31 // pred_check_branch
          %187 = sbr.rel (%p185) target = $region40
        $region39: #{tpu_custom_call.1} parent=31 // pred_region
          %189 = dma.done [#allocation7], 4608
        $region40: #{tpu_custom_call.1} parent=31 // pred_fallthru
          _
        %s190 = sand.u32 %s29, 1
        %s191 = scalar_lea.sflag [#allocation4], %s190
        %s192 = sand.u32 %s29, 1
        %s193 = smul.addr %s192, 288
        %s194 = scalar_lea.vmem [#allocation3], %s193
        %p195 = pneg %p42
        %p196 = pneg %p39
        %p197 = pneg %p63
        %p198 = pneg %p60
        %p199 = pneg %p84
        %p200 = pneg %p81
        %p201 = pneg %p110
        %p202 = pneg %p107
        %s203 = sand.u32 %s97, 1
        %s204 = scalar_lea.sflag [#allocation5], %s203
        %s205 = sand.u32 %s97, 1
        %s206 = smul.addr %s205, 256
        %s207 = scalar_lea.vmem [#allocation8], %s206
        %v209 = vld [vmem:[%s2] sm:$0x1]
        %v210 = vld [vmem:[%s179] sm:$0xff]
        %v211 = vld [vmem:[%s179 + $0x8] sm:$0xff]
        %v212 = vld [vmem:[%s179 + $0x10] sm:$0xff]
        %v213 = vld [vmem:[%s179 + $0x18] sm:$0xff]
        %v214 = vld [vmem:[%s179 + $0x20] sm:$0xff]
        %v215 = vld [vmem:[%s179 + $0x28] sm:$0xff]
        %v216 = vld [vmem:[%s179 + $0x30] sm:$0xff]
        %v217 = vld [vmem:[%s179 + $0x38] sm:$0xff]
        %v218 = vld [vmem:[%s179 + $0x40] sm:$0xff]
        %v219 = vld [vmem:[%s179 + $0x48] sm:$0xff]
        %v220 = vld [vmem:[%s179 + $0x50] sm:$0xff]
        %v221 = vld [vmem:[%s179 + $0x58] sm:$0xff]
        %v222 = vld [vmem:[%s179 + $0x60] sm:$0xff]
        %v223 = vld [vmem:[%s179 + $0x68] sm:$0xff]
        %v224 = vld [vmem:[%s179 + $0x70] sm:$0xff]
        %v225 = vld [vmem:[%s179 + $0x78] sm:$0xff]
        %v226 = vld [vmem:[%s179 + $0x80] sm:$0xff]
        %v227 = vld [vmem:[%s179 + $0x88] sm:$0xff]
        %v228 = vld [vmem:[%s179 + $0x90] sm:$0xff]
        %v229 = vld [vmem:[%s179 + $0x98] sm:$0xff]
        %v230 = vld [vmem:[%s179 + $0xa0] sm:$0xff]
        %v231 = vld [vmem:[%s179 + $0xa8] sm:$0xff]
        %v232 = vld [vmem:[%s179 + $0xb0] sm:$0xff]
        %v233 = vld [vmem:[%s179 + $0xb8] sm:$0xff]
        %v234 = vld [vmem:[%s179 + $0xc0] sm:$0xff]
        %v235 = vld [vmem:[%s179 + $0xc8] sm:$0xff]
        %v236 = vld [vmem:[%s179 + $0xd0] sm:$0xff]
        %v237 = vld [vmem:[%s179 + $0xd8] sm:$0xff]
        %v238 = vld [vmem:[%s179 + $0xe0] sm:$0xff]
        %v239 = vld [vmem:[%s179 + $0xe8] sm:$0xff]
        %v240 = vld [vmem:[%s179 + $0xf0] sm:$0xff]
        %v241 = vld [vmem:[%s179 + $0xf8] sm:$0xff]
        %v242 = vld [vmem:[#allocation6] sm:$0xf]
        %v243 = vld [vmem:[#allocation6 + $0x4] sm:$0xf]
        %v244 = vld [vmem:[#allocation6 + $0x8] sm:$0xf]
        %v245 = vld [vmem:[#allocation6 + $0xc] sm:$0xf]
        %v246 = vld [vmem:[#allocation6 + $0x10] sm:$0xf]
        %v247 = vld [vmem:[#allocation6 + $0x14] sm:$0xf]
        %v248 = vld [vmem:[#allocation6 + $0x18] sm:$0xf]
        %v249 = vld [vmem:[#allocation6 + $0x1c] sm:$0xf]
        %v250 = vld [vmem:[#allocation6 + $0x20] sm:$0xf]
        %v251 = vld [vmem:[#allocation6 + $0x24] sm:$0xf]
        %v252 = vld [vmem:[#allocation6 + $0x28] sm:$0xf]
        %v253 = vld [vmem:[#allocation6 + $0x2c] sm:$0xf]
        %v254 = vld [vmem:[#allocation6 + $0x30] sm:$0xf]
        %v255 = vld [vmem:[#allocation6 + $0x34] sm:$0xf]
        %v256 = vld [vmem:[#allocation6 + $0x38] sm:$0xf]
        %v257 = vld [vmem:[#allocation6 + $0x3c] sm:$0xf]
        %v258 = vld [vmem:[#allocation6 + $0x40] sm:$0xf]
        %v259 = vld [vmem:[#allocation6 + $0x44] sm:$0xf]
        %v260 = vld [vmem:[#allocation6 + $0x48] sm:$0xf]
        %v261 = vld [vmem:[#allocation6 + $0x4c] sm:$0xf]
        %v262 = vld [vmem:[#allocation6 + $0x50] sm:$0xf]
        %v263 = vld [vmem:[#allocation6 + $0x54] sm:$0xf]
        %v264 = vld [vmem:[#allocation6 + $0x58] sm:$0xf]
        %v265 = vld [vmem:[#allocation6 + $0x5c] sm:$0xf]
        %v298 = vunpack.c.l.b16 %v210
        %v299 = vunpack.c.h.b16 %v210
        %v300 = vunpack.c.l.b16 %v211
        %v301 = vunpack.c.h.b16 %v211
        %v302 = vunpack.c.l.b16 %v212
        %v303 = vunpack.c.h.b16 %v212
        %v304 = vunpack.c.l.b16 %v213
        %v305 = vunpack.c.h.b16 %v213
        %v306 = vunpack.c.l.b16 %v214
        %v307 = vunpack.c.h.b16 %v214
        %v308 = vunpack.c.l.b16 %v215
        %v309 = vunpack.c.h.b16 %v215
        %v310 = vunpack.c.l.b16 %v216
        %v311 = vunpack.c.h.b16 %v216
        %v312 = vunpack.c.l.b16 %v217
        %v313 = vunpack.c.h.b16 %v217
        %v314 = vunpack.c.l.b16 %v218
        %v315 = vunpack.c.h.b16 %v218
        %v316 = vunpack.c.l.b16 %v219
        %v317 = vunpack.c.h.b16 %v219
        %v318 = vunpack.c.l.b16 %v220
        %v319 = vunpack.c.h.b16 %v220
        %v320 = vunpack.c.l.b16 %v221
        %v321 = vunpack.c.h.b16 %v221
        %v322 = vunpack.c.l.b16 %v222
        %v323 = vunpack.c.h.b16 %v222
        %v324 = vunpack.c.l.b16 %v223
        %v325 = vunpack.c.h.b16 %v223
        %v326 = vunpack.c.l.b16 %v224
        %v327 = vunpack.c.h.b16 %v224
        %v328 = vunpack.c.l.b16 %v225
        %v329 = vunpack.c.h.b16 %v225
        %v330 = vunpack.c.l.b16 %v226
        %v331 = vunpack.c.h.b16 %v226
        %v332 = vunpack.c.l.b16 %v227
        %v333 = vunpack.c.h.b16 %v227
        %v334 = vunpack.c.l.b16 %v228
        %v335 = vunpack.c.h.b16 %v228
        %v336 = vunpack.c.l.b16 %v229
        %v337 = vunpack.c.h.b16 %v229
        %v338 = vunpack.c.l.b16 %v230
        %v339 = vunpack.c.h.b16 %v230
        %v340 = vunpack.c.l.b16 %v231
        %v341 = vunpack.c.h.b16 %v231
        %v342 = vunpack.c.l.b16 %v232
        %v343 = vunpack.c.h.b16 %v232
        %v344 = vunpack.c.l.b16 %v233
        %v345 = vunpack.c.h.b16 %v233
        %v346 = vunpack.c.l.b16 %v234
        %v347 = vunpack.c.h.b16 %v234
        %v348 = vunpack.c.l.b16 %v235
        %v349 = vunpack.c.h.b16 %v235
        %v350 = vunpack.c.l.b16 %v236
        %v351 = vunpack.c.h.b16 %v236
        %v352 = vunpack.c.l.b16 %v237
        %v353 = vunpack.c.h.b16 %v237
        %v354 = vunpack.c.l.b16 %v238
        %v355 = vunpack.c.h.b16 %v238
        %v356 = vunpack.c.l.b16 %v239
        %v357 = vunpack.c.h.b16 %v239
        %v358 = vunpack.c.l.b16 %v240
        %v359 = vunpack.c.h.b16 %v240
        %v360 = vunpack.c.l.b16 %v241
        %v361 = vunpack.c.h.b16 %v241
        %v362 = vpack.c.b16 %v300, %v298
        %v363 = vpack.c.b16 %v301, %v299
        %v364 = vpack.c.b16 %v304, %v302
        %v365 = vpack.c.b16 %v305, %v303
        %v366 = vpack.c.b16 %v308, %v306
        %v367 = vpack.c.b16 %v309, %v307
        %v368 = vpack.c.b16 %v312, %v310
        %v369 = vpack.c.b16 %v313, %v311
        %v370 = vpack.c.b16 %v316, %v314
        %v371 = vpack.c.b16 %v317, %v315
        %v372 = vpack.c.b16 %v320, %v318
        %v373 = vpack.c.b16 %v321, %v319
        %v374 = vpack.c.b16 %v324, %v322
        %v375 = vpack.c.b16 %v325, %v323
        %v376 = vpack.c.b16 %v328, %v326
        %v377 = vpack.c.b16 %v329, %v327
        %v378 = vpack.c.b16 %v332, %v330
        %v379 = vpack.c.b16 %v333, %v331
        %v380 = vpack.c.b16 %v336, %v334
        %v381 = vpack.c.b16 %v337, %v335
        %v382 = vpack.c.b16 %v340, %v338
        %v383 = vpack.c.b16 %v341, %v339
        %v384 = vpack.c.b16 %v344, %v342
        %v385 = vpack.c.b16 %v345, %v343
        %v386 = vpack.c.b16 %v348, %v346
        %v387 = vpack.c.b16 %v349, %v347
        %v388 = vpack.c.b16 %v352, %v350
        %v389 = vpack.c.b16 %v353, %v351
        %v390 = vpack.c.b16 %v356, %v354
        %v391 = vpack.c.b16 %v357, %v355
        %v392 = vpack.c.b16 %v360, %v358
        %v393 = vpack.c.b16 %v361, %v359
        %v434 = vunpack.c.l.b16 %v242
        %v435 = vunpack.c.l.b16 %v243
        %v436 = vunpack.c.l.b16 %v244
        %v437 = vunpack.c.l.b16 %v245
        %v438 = vunpack.c.l.b16 %v246
        %v439 = vunpack.c.l.b16 %v247
        %v440 = vunpack.c.l.b16 %v248
        %v441 = vunpack.c.l.b16 %v249
        %v442 = vunpack.c.l.b16 %v250
        %v443 = vunpack.c.l.b16 %v251
        %v444 = vunpack.c.l.b16 %v252
        %v445 = vunpack.c.l.b16 %v253
        %v446 = vunpack.c.l.b16 %v254
        %v447 = vunpack.c.l.b16 %v255
        %v448 = vunpack.c.l.b16 %v256
        %v449 = vunpack.c.l.b16 %v257
        %v450 = vunpack.c.l.b16 %v258
        %v451 = vunpack.c.l.b16 %v259
        %v452 = vunpack.c.l.b16 %v260
        %v453 = vunpack.c.l.b16 %v261
        %v454 = vunpack.c.l.b16 %v262
        %v455 = vunpack.c.l.b16 %v263
        %v456 = vunpack.c.l.b16 %v264
        %v457 = vunpack.c.l.b16 %v265
        %v458 = vpack.c.b16 %v435, %v434
        %v459 = vpack.c.b16 %v437, %v436
        %v460 = vpack.c.b16 %v439, %v438
        %v461 = vpack.c.b16 %v441, %v440
        %v462 = vpack.c.b16 %v443, %v442
        %v463 = vpack.c.b16 %v445, %v444
        %v464 = vpack.c.b16 %v447, %v446
        %v465 = vpack.c.b16 %v449, %v448
        %v466 = vpack.c.b16 %v451, %v450
        %v467 = vpack.c.b16 %v453, %v452
        %v468 = vpack.c.b16 %v455, %v454
        %v469 = vpack.c.b16 %v457, %v456
        %vm482 = vcmask 523264
        %v484 = vsel %vm482, %v363, 0
        %v487 = vsel %vm482, %v365, 0
        %v490 = vsel %vm482, %v367, 0
        %v493 = vsel %vm482, %v369, 0
        %v496 = vsel %vm482, %v371, 0
        %v499 = vsel %vm482, %v373, 0
        %v502 = vsel %vm482, %v375, 0
        %v505 = vsel %vm482, %v377, 0
        %v508 = vsel %vm482, %v379, 0
        %v511 = vsel %vm482, %v381, 0
        %v514 = vsel %vm482, %v383, 0
        %v517 = vsel %vm482, %v385, 0
        %v520 = vsel %vm482, %v387, 0
        %v523 = vsel %vm482, %v389, 0
        %v526 = vsel %vm482, %v391, 0
        %v529 = vsel %vm482, %v393, 0
        %531 = vmatpush.bf16.msra.mxu0 %v465
        %532 = vmatpush.bf16.msra.mxu0 %v464
        %533 = vmatpush.bf16.msra.mxu0 %v463
        %534 = vmatpush.bf16.msra.mxu0 %v462
        %535 = vmatpush.bf16.msra.mxu0 %v461
        %536 = vmatpush.bf16.msra.mxu0 %v460
        %537 = vmatpush.bf16.msra.mxu0 %v459
        %538 = vmatpush.bf16.msra.mxu0 %v458
        %539 = vmatmul.bf16.gmra.mxu0 %v362
        %v540 = vpop.f32.mrf.mxu0
        %v541 = vadd.f32 0.0, %v540
        %v542 = vpop.f32.mrf.mxu0
        %v543 = vadd.f32 0.0, %v542
        %544 = vmatmul.bf16.gmra.mxu0 %v364
        %v545 = vpop.f32.mrf.mxu0
        %v546 = vadd.f32 0.0, %v545
        %v547 = vpop.f32.mrf.mxu0
        %v548 = vadd.f32 0.0, %v547
        %549 = vmatmul.bf16.gmra.mxu0 %v366
        %v550 = vpop.f32.mrf.mxu0
        %v551 = vadd.f32 0.0, %v550
        %v552 = vpop.f32.mrf.mxu0
        %v553 = vadd.f32 0.0, %v552
        %554 = vmatmul.bf16.gmra.mxu0 %v368
        %v555 = vpop.f32.mrf.mxu0
        %v556 = vadd.f32 0.0, %v555
        %v557 = vpop.f32.mrf.mxu0
        %v558 = vadd.f32 0.0, %v557
        %559 = vmatmul.bf16.gmra.mxu0 %v370
        %v560 = vpop.f32.mrf.mxu0
        %v561 = vadd.f32 0.0, %v560
        %v562 = vpop.f32.mrf.mxu0
        %v563 = vadd.f32 0.0, %v562
        %564 = vmatmul.bf16.gmra.mxu0 %v372
        %v565 = vpop.f32.mrf.mxu0
        %v566 = vadd.f32 0.0, %v565
        %v567 = vpop.f32.mrf.mxu0
        %v568 = vadd.f32 0.0, %v567
        %569 = vmatmul.bf16.gmra.mxu0 %v374
        %v570 = vpop.f32.mrf.mxu0
        %v571 = vadd.f32 0.0, %v570
        %v572 = vpop.f32.mrf.mxu0
        %v573 = vadd.f32 0.0, %v572
        %574 = vmatmul.bf16.gmra.mxu0 %v376
        %v575 = vpop.f32.mrf.mxu0
        %v576 = vadd.f32 0.0, %v575
        %v577 = vpop.f32.mrf.mxu0
        %v578 = vadd.f32 0.0, %v577
        %579 = vmatmul.bf16.gmra.mxu0 %v378
        %v580 = vpop.f32.mrf.mxu0
        %v581 = vadd.f32 0.0, %v580
        %v582 = vpop.f32.mrf.mxu0
        %v583 = vadd.f32 0.0, %v582
        %584 = vmatmul.bf16.gmra.mxu0 %v380
        %v585 = vpop.f32.mrf.mxu0
        %v586 = vadd.f32 0.0, %v585
        %v587 = vpop.f32.mrf.mxu0
        %v588 = vadd.f32 0.0, %v587
        %589 = vmatmul.bf16.gmra.mxu0 %v382
        %v590 = vpop.f32.mrf.mxu0
        %v591 = vadd.f32 0.0, %v590
        %v592 = vpop.f32.mrf.mxu0
        %v593 = vadd.f32 0.0, %v592
        %594 = vmatmul.bf16.gmra.mxu0 %v384
        %v595 = vpop.f32.mrf.mxu0
        %v596 = vadd.f32 0.0, %v595
        %v597 = vpop.f32.mrf.mxu0
        %v598 = vadd.f32 0.0, %v597
        %599 = vmatmul.bf16.gmra.mxu0 %v386
        %v600 = vpop.f32.mrf.mxu0
        %v601 = vadd.f32 0.0, %v600
        %v602 = vpop.f32.mrf.mxu0
        %v603 = vadd.f32 0.0, %v602
        %604 = vmatmul.bf16.gmra.mxu0 %v388
        %v605 = vpop.f32.mrf.mxu0
        %v606 = vadd.f32 0.0, %v605
        %v607 = vpop.f32.mrf.mxu0
        %v608 = vadd.f32 0.0, %v607
        %609 = vmatmul.bf16.gmra.mxu0 %v390
        %v610 = vpop.f32.mrf.mxu0
        %v611 = vadd.f32 0.0, %v610
        %v612 = vpop.f32.mrf.mxu0
        %v613 = vadd.f32 0.0, %v612
        %614 = vmatmul.bf16.gmra.mxu0 %v392
        %v615 = vpop.f32.mrf.mxu0
        %v616 = vadd.f32 0.0, %v615
        %v617 = vpop.f32.mrf.mxu0
        %v618 = vadd.f32 0.0, %v617
        %619 = vdwg.mxu0
        %620 = vmatpush.bf16.msra.mxu0 0
        %621 = vmatpush.bf16.msra.mxu0 0
        %622 = vmatpush.bf16.msra.mxu0 0
        %623 = vmatpush.bf16.msra.mxu0 0
        %624 = vmatpush.bf16.msra.mxu0 %v469
        %625 = vmatpush.bf16.msra.mxu0 %v468
        %626 = vmatpush.bf16.msra.mxu0 %v467
        %627 = vmatpush.bf16.msra.mxu0 %v466
        %628 = vmatmul.bf16.gmra.mxu0 %v484
        %v629 = vpop.f32.mrf.mxu0
        %v630 = vadd.f32 %v541, %v629
        %v631 = vpop.f32.mrf.mxu0
        %v632 = vadd.f32 %v543, %v631
        %633 = vmatmul.bf16.gmra.mxu0 %v487
        %v634 = vpop.f32.mrf.mxu0
        %v635 = vadd.f32 %v546, %v634
        %v636 = vpop.f32.mrf.mxu0
        %v637 = vadd.f32 %v548, %v636
        %638 = vmatmul.bf16.gmra.mxu0 %v490
        %v639 = vpop.f32.mrf.mxu0
        %v640 = vadd.f32 %v551, %v639
        %v641 = vpop.f32.mrf.mxu0
        %v642 = vadd.f32 %v553, %v641
        %643 = vmatmul.bf16.gmra.mxu0 %v493
        %v644 = vpop.f32.mrf.mxu0
        %v645 = vadd.f32 %v556, %v644
        %v646 = vpop.f32.mrf.mxu0
        %v647 = vadd.f32 %v558, %v646
        %648 = vmatmul.bf16.gmra.mxu0 %v496
        %v649 = vpop.f32.mrf.mxu0
        %v650 = vadd.f32 %v561, %v649
        %v651 = vpop.f32.mrf.mxu0
        %v652 = vadd.f32 %v563, %v651
        %653 = vmatmul.bf16.gmra.mxu0 %v499
        %v654 = vpop.f32.mrf.mxu0
        %v655 = vadd.f32 %v566, %v654
        %v656 = vpop.f32.mrf.mxu0
        %v657 = vadd.f32 %v568, %v656
        %658 = vmatmul.bf16.gmra.mxu0 %v502
        %v659 = vpop.f32.mrf.mxu0
        %v660 = vadd.f32 %v571, %v659
        %v661 = vpop.f32.mrf.mxu0
        %v662 = vadd.f32 %v573, %v661
        %663 = vmatmul.bf16.gmra.mxu0 %v505
        %v664 = vpop.f32.mrf.mxu0
        %v665 = vadd.f32 %v576, %v664
        %v666 = vpop.f32.mrf.mxu0
        %v667 = vadd.f32 %v578, %v666
        %668 = vmatmul.bf16.gmra.mxu0 %v508
        %v669 = vpop.f32.mrf.mxu0
        %v670 = vadd.f32 %v581, %v669
        %v671 = vpop.f32.mrf.mxu0
        %v672 = vadd.f32 %v583, %v671
        %673 = vmatmul.bf16.gmra.mxu0 %v511
        %v674 = vpop.f32.mrf.mxu0
        %v675 = vadd.f32 %v586, %v674
        %v676 = vpop.f32.mrf.mxu0
        %v677 = vadd.f32 %v588, %v676
        %678 = vmatmul.bf16.gmra.mxu0 %v514
        %v679 = vpop.f32.mrf.mxu0
        %v680 = vadd.f32 %v591, %v679
        %v681 = vpop.f32.mrf.mxu0
        %v682 = vadd.f32 %v593, %v681
        %683 = vmatmul.bf16.gmra.mxu0 %v517
        %v684 = vpop.f32.mrf.mxu0
        %v685 = vadd.f32 %v596, %v684
        %v686 = vpop.f32.mrf.mxu0
        %v687 = vadd.f32 %v598, %v686
        %688 = vmatmul.bf16.gmra.mxu0 %v520
        %v689 = vpop.f32.mrf.mxu0
        %v690 = vadd.f32 %v601, %v689
        %v691 = vpop.f32.mrf.mxu0
        %v692 = vadd.f32 %v603, %v691
        %693 = vmatmul.bf16.gmra.mxu0 %v523
        %v694 = vpop.f32.mrf.mxu0
        %v695 = vadd.f32 %v606, %v694
        %v696 = vpop.f32.mrf.mxu0
        %v697 = vadd.f32 %v608, %v696
        %698 = vmatmul.bf16.gmra.mxu0 %v526
        %v699 = vpop.f32.mrf.mxu0
        %v700 = vadd.f32 %v611, %v699
        %v701 = vpop.f32.mrf.mxu0
        %v702 = vadd.f32 %v613, %v701
        %703 = vmatmul.bf16.gmra.mxu0 %v529
        %v704 = vpop.f32.mrf.mxu0
        %v705 = vadd.f32 %v616, %v704
        %v706 = vpop.f32.mrf.mxu0
        %v707 = vadd.f32 %v618, %v706
        %708 = vdwg.mxu0
        %709 = vst [vmem:[#allocation2] sm:$0xff] %v630
        %710 = vst [vmem:[#allocation2 + $0x8] sm:$0xff] %v632
        %711 = vst [vmem:[#allocation2 + $0x10] sm:$0xff] %v635
        %712 = vst [vmem:[#allocation2 + $0x18] sm:$0xff] %v637
        %713 = vst [vmem:[#allocation2 + $0x20] sm:$0xff] %v640
        %714 = vst [vmem:[#allocation2 + $0x28] sm:$0xff] %v642
        %715 = vst [vmem:[#allocation2 + $0x30] sm:$0xff] %v645
        %716 = vst [vmem:[#allocation2 + $0x38] sm:$0xff] %v647
        %717 = vst [vmem:[#allocation2 + $0x40] sm:$0xff] %v650
        %718 = vst [vmem:[#allocation2 + $0x48] sm:$0xff] %v652
        %719 = vst [vmem:[#allocation2 + $0x50] sm:$0xff] %v655
        %720 = vst [vmem:[#allocation2 + $0x58] sm:$0xff] %v657
        %721 = vst [vmem:[#allocation2 + $0x60] sm:$0xff] %v660
        %722 = vst [vmem:[#allocation2 + $0x68] sm:$0xff] %v662
        %723 = vst [vmem:[#allocation2 + $0x70] sm:$0xff] %v665
        %724 = vst [vmem:[#allocation2 + $0x78] sm:$0xff] %v667
        %725 = vst [vmem:[#allocation2 + $0x80] sm:$0xff] %v670
        %726 = vst [vmem:[#allocation2 + $0x88] sm:$0xff] %v672
        %727 = vst [vmem:[#allocation2 + $0x90] sm:$0xff] %v675
        %728 = vst [vmem:[#allocation2 + $0x98] sm:$0xff] %v677
        %729 = vst [vmem:[#allocation2 + $0xa0] sm:$0xff] %v680
        %730 = vst [vmem:[#allocation2 + $0xa8] sm:$0xff] %v682
        %731 = vst [vmem:[#allocation2 + $0xb0] sm:$0xff] %v685
        %732 = vst [vmem:[#allocation2 + $0xb8] sm:$0xff] %v687
        %733 = vst [vmem:[#allocation2 + $0xc0] sm:$0xff] %v690
        %734 = vst [vmem:[#allocation2 + $0xc8] sm:$0xff] %v692
        %735 = vst [vmem:[#allocation2 + $0xd0] sm:$0xff] %v695
        %736 = vst [vmem:[#allocation2 + $0xd8] sm:$0xff] %v697
        %737 = vst [vmem:[#allocation2 + $0xe0] sm:$0xff] %v700
        %738 = vst [vmem:[#allocation2 + $0xe8] sm:$0xff] %v702
        %739 = vst [vmem:[#allocation2 + $0xf0] sm:$0xff] %v705
        %740 = vst [vmem:[#allocation2 + $0xf8] sm:$0xff] %v707
        %v741 = vld [vmem:[#allocation2] sm:$0xff]
        %v742 = vld [vmem:[#allocation2 + $0x8] sm:$0xff]
        %v743 = vld [vmem:[#allocation2 + $0x10] sm:$0xff]
        %v744 = vld [vmem:[#allocation2 + $0x18] sm:$0xff]
        %v745 = vld [vmem:[#allocation2 + $0x20] sm:$0xff]
        %v746 = vld [vmem:[#allocation2 + $0x28] sm:$0xff]
        %v747 = vld [vmem:[#allocation2 + $0x30] sm:$0xff]
        %v748 = vld [vmem:[#allocation2 + $0x38] sm:$0xff]
        %v749 = vld [vmem:[#allocation2 + $0x40] sm:$0xff]
        %v750 = vld [vmem:[#allocation2 + $0x48] sm:$0xff]
        %v751 = vld [vmem:[#allocation2 + $0x50] sm:$0xff]
        %v752 = vld [vmem:[#allocation2 + $0x58] sm:$0xff]
        %v753 = vld [vmem:[#allocation2 + $0x60] sm:$0xff]
        %v754 = vld [vmem:[#allocation2 + $0x68] sm:$0xff]
        %v755 = vld [vmem:[#allocation2 + $0x70] sm:$0xff]
        %v756 = vld [vmem:[#allocation2 + $0x78] sm:$0xff]
        %v757 = vld [vmem:[#allocation2 + $0x80] sm:$0xff]
        %v758 = vld [vmem:[#allocation2 + $0x88] sm:$0xff]
        %v759 = vld [vmem:[#allocation2 + $0x90] sm:$0xff]
        %v760 = vld [vmem:[#allocation2 + $0x98] sm:$0xff]
        %v761 = vld [vmem:[#allocation2 + $0xa0] sm:$0xff]
        %v762 = vld [vmem:[#allocation2 + $0xa8] sm:$0xff]
        %v763 = vld [vmem:[#allocation2 + $0xb0] sm:$0xff]
        %v764 = vld [vmem:[#allocation2 + $0xb8] sm:$0xff]
        %v765 = vld [vmem:[#allocation2 + $0xc0] sm:$0xff]
        %v766 = vld [vmem:[#allocation2 + $0xc8] sm:$0xff]
        %v767 = vld [vmem:[#allocation2 + $0xd0] sm:$0xff]
        %v768 = vld [vmem:[#allocation2 + $0xd8] sm:$0xff]
        %v769 = vld [vmem:[#allocation2 + $0xe0] sm:$0xff]
        %v770 = vld [vmem:[#allocation2 + $0xe8] sm:$0xff]
        %v771 = vld [vmem:[#allocation2 + $0xf0] sm:$0xff]
        %v772 = vld [vmem:[#allocation2 + $0xf8] sm:$0xff]
        %v773 = vld [vmem:[%s179 + $0x10] sm:$0xff]
        %v774 = vld [vmem:[%s179 + $0x18] sm:$0xff]
        %v775 = vld [vmem:[%s179 + $0x20] sm:$0xff]
        %v776 = vld [vmem:[%s179 + $0x28] sm:$0xff]
        %v777 = vld [vmem:[%s179 + $0x30] sm:$0xff]
        %v778 = vld [vmem:[%s179 + $0x38] sm:$0xff]
        %v779 = vld [vmem:[%s179 + $0x40] sm:$0xff]
        %v780 = vld [vmem:[%s179 + $0x48] sm:$0xff]
        %v781 = vld [vmem:[%s179 + $0x50] sm:$0xff]
        %v782 = vld [vmem:[%s179 + $0x58] sm:$0xff]
        %v783 = vld [vmem:[%s179 + $0x60] sm:$0xff]
        %v784 = vld [vmem:[%s179 + $0x68] sm:$0xff]
        %v785 = vld [vmem:[%s179 + $0x70] sm:$0xff]
        %v786 = vld [vmem:[%s179 + $0x78] sm:$0xff]
        %v787 = vld [vmem:[%s179 + $0x80] sm:$0xff]
        %v788 = vld [vmem:[%s179 + $0x88] sm:$0xff]
        %v789 = vld [vmem:[%s179 + $0x90] sm:$0xff]
        %v790 = vld [vmem:[%s179 + $0x98] sm:$0xff]
        %v791 = vld [vmem:[%s179 + $0xa0] sm:$0xff]
        %v792 = vld [vmem:[%s179 + $0xa8] sm:$0xff]
        %v793 = vld [vmem:[%s179 + $0xb0] sm:$0xff]
        %v794 = vld [vmem:[%s179 + $0xb8] sm:$0xff]
        %v795 = vld [vmem:[%s179 + $0xc0] sm:$0xff]
        %v796 = vld [vmem:[%s179 + $0xc8] sm:$0xff]
        %v797 = vld [vmem:[%s179 + $0xd0] sm:$0xff]
        %v798 = vld [vmem:[%s179 + $0xd8] sm:$0xff]
        %v799 = vld [vmem:[%s179 + $0xe0] sm:$0xff]
        %v800 = vld [vmem:[%s179 + $0xe8] sm:$0xff]
        %v801 = vld [vmem:[%s179 + $0xf0] sm:$0xff]
        %v802 = vld [vmem:[%s179 + $0xf8] sm:$0xff]
        %v803 = vld [vmem:[%s179 + $0x100] sm:$0xff]
        %v804 = vld [vmem:[%s179 + $0x108] sm:$0xff]
        %s805 = scalar_lea.vmem [#allocation6], 96
        %v806 = vld [vmem:[%s805] sm:$0xf]
        %v807 = vld [vmem:[%s805 + $0x4] sm:$0xf]
        %v808 = vld [vmem:[%s805 + $0x8] sm:$0xf]
        %v809 = vld [vmem:[%s805 + $0xc] sm:$0xf]
        %v810 = vld [vmem:[%s805 + $0x10] sm:$0xf]
        %v811 = vld [vmem:[%s805 + $0x14] sm:$0xf]
        %v812 = vld [vmem:[%s805 + $0x18] sm:$0xf]
        %v813 = vld [vmem:[%s805 + $0x1c] sm:$0xf]
        %v814 = vld [vmem:[%s805 + $0x20] sm:$0xf]
        %v815 = vld [vmem:[%s805 + $0x24] sm:$0xf]
        %v816 = vld [vmem:[%s805 + $0x28] sm:$0xf]
        %v817 = vld [vmem:[%s805 + $0x2c] sm:$0xf]
        %v818 = vld [vmem:[%s805 + $0x30] sm:$0xf]
        %v819 = vld [vmem:[%s805 + $0x34] sm:$0xf]
        %v820 = vld [vmem:[%s805 + $0x38] sm:$0xf]
        %v821 = vld [vmem:[%s805 + $0x3c] sm:$0xf]
        %v822 = vld [vmem:[%s805 + $0x40] sm:$0xf]
        %v823 = vld [vmem:[%s805 + $0x44] sm:$0xf]
        %v824 = vld [vmem:[%s805 + $0x48] sm:$0xf]
        %v825 = vld [vmem:[%s805 + $0x4c] sm:$0xf]
        %v826 = vld [vmem:[%s805 + $0x50] sm:$0xf]
        %v827 = vld [vmem:[%s805 + $0x54] sm:$0xf]
        %v828 = vld [vmem:[%s805 + $0x58] sm:$0xf]
        %v829 = vld [vmem:[%s805 + $0x5c] sm:$0xf]
        %v862 = vunpack.c.l.b16 %v773
        %v863 = vunpack.c.h.b16 %v773
        %v864 = vunpack.c.l.b16 %v774
        %v865 = vunpack.c.h.b16 %v774
        %v866 = vunpack.c.l.b16 %v775
        %v867 = vunpack.c.h.b16 %v775
        %v868 = vunpack.c.l.b16 %v776
        %v869 = vunpack.c.h.b16 %v776
        %v870 = vunpack.c.l.b16 %v777
        %v871 = vunpack.c.h.b16 %v777
        %v872 = vunpack.c.l.b16 %v778
        %v873 = vunpack.c.h.b16 %v778
        %v874 = vunpack.c.l.b16 %v779
        %v875 = vunpack.c.h.b16 %v779
        %v876 = vunpack.c.l.b16 %v780
        %v877 = vunpack.c.h.b16 %v780
        %v878 = vunpack.c.l.b16 %v781
        %v879 = vunpack.c.h.b16 %v781
        %v880 = vunpack.c.l.b16 %v782
        %v881 = vunpack.c.h.b16 %v782
        %v882 = vunpack.c.l.b16 %v783
        %v883 = vunpack.c.h.b16 %v783
        %v884 = vunpack.c.l.b16 %v784
        %v885 = vunpack.c.h.b16 %v784
        %v886 = vunpack.c.l.b16 %v785
        %v887 = vunpack.c.h.b16 %v785
        %v888 = vunpack.c.l.b16 %v786
        %v889 = vunpack.c.h.b16 %v786
        %v890 = vunpack.c.l.b16 %v787
        %v891 = vunpack.c.h.b16 %v787
        %v892 = vunpack.c.l.b16 %v788
        %v893 = vunpack.c.h.b16 %v788
        %v894 = vunpack.c.l.b16 %v789
        %v895 = vunpack.c.h.b16 %v789
        %v896 = vunpack.c.l.b16 %v790
        %v897 = vunpack.c.h.b16 %v790
        %v898 = vunpack.c.l.b16 %v791
        %v899 = vunpack.c.h.b16 %v791
        %v900 = vunpack.c.l.b16 %v792
        %v901 = vunpack.c.h.b16 %v792
        %v902 = vunpack.c.l.b16 %v793
        %v903 = vunpack.c.h.b16 %v793
        %v904 = vunpack.c.l.b16 %v794
        %v905 = vunpack.c.h.b16 %v794
        %v906 = vunpack.c.l.b16 %v795
        %v907 = vunpack.c.h.b16 %v795
        %v908 = vunpack.c.l.b16 %v796
        %v909 = vunpack.c.h.b16 %v796
        %v910 = vunpack.c.l.b16 %v797
        %v911 = vunpack.c.h.b16 %v797
        %v912 = vunpack.c.l.b16 %v798
        %v913 = vunpack.c.h.b16 %v798
        %v914 = vunpack.c.l.b16 %v799
        %v915 = vunpack.c.h.b16 %v799
        %v916 = vunpack.c.l.b16 %v800
        %v917 = vunpack.c.h.b16 %v800
        %v918 = vunpack.c.l.b16 %v801
        %v919 = vunpack.c.h.b16 %v801
        %v920 = vunpack.c.l.b16 %v802
        %v921 = vunpack.c.h.b16 %v802
        %v922 = vunpack.c.l.b16 %v803
        %v923 = vunpack.c.h.b16 %v803
        %v924 = vunpack.c.l.b16 %v804
        %v925 = vunpack.c.h.b16 %v804
        %v926 = vpack.c.b16 %v864, %v862
        %v927 = vpack.c.b16 %v865, %v863
        %v928 = vpack.c.b16 %v868, %v866
        %v929 = vpack.c.b16 %v869, %v867
        %v930 = vpack.c.b16 %v872, %v870
        %v931 = vpack.c.b16 %v873, %v871
        %v932 = vpack.c.b16 %v876, %v874
        %v933 = vpack.c.b16 %v877, %v875
        %v934 = vpack.c.b16 %v880, %v878
        %v935 = vpack.c.b16 %v881, %v879
        %v936 = vpack.c.b16 %v884, %v882
        %v937 = vpack.c.b16 %v885, %v883
        %v938 = vpack.c.b16 %v888, %v886
        %v939 = vpack.c.b16 %v889, %v887
        %v940 = vpack.c.b16 %v892, %v890
        %v941 = vpack.c.b16 %v893, %v891
        %v942 = vpack.c.b16 %v896, %v894
        %v943 = vpack.c.b16 %v897, %v895
        %v944 = vpack.c.b16 %v900, %v898
        %v945 = vpack.c.b16 %v901, %v899
        %v946 = vpack.c.b16 %v904, %v902
        %v947 = vpack.c.b16 %v905, %v903
        %v948 = vpack.c.b16 %v908, %v906
        %v949 = vpack.c.b16 %v909, %v907
        %v950 = vpack.c.b16 %v912, %v910
        %v951 = vpack.c.b16 %v913, %v911
        %v952 = vpack.c.b16 %v916, %v914
        %v953 = vpack.c.b16 %v917, %v915
        %v954 = vpack.c.b16 %v920, %v918
        %v955 = vpack.c.b16 %v921, %v919
        %v956 = vpack.c.b16 %v924, %v922
        %v957 = vpack.c.b16 %v925, %v923
        %v998 = vunpack.c.l.b16 %v806
        %v999 = vunpack.c.l.b16 %v807
        %v1000 = vunpack.c.l.b16 %v808
        %v1001 = vunpack.c.l.b16 %v809
        %v1002 = vunpack.c.l.b16 %v810
        %v1003 = vunpack.c.l.b16 %v811
        %v1004 = vunpack.c.l.b16 %v812
        %v1005 = vunpack.c.l.b16 %v813
        %v1006 = vunpack.c.l.b16 %v814
        %v1007 = vunpack.c.l.b16 %v815
        %v1008 = vunpack.c.l.b16 %v816
        %v1009 = vunpack.c.l.b16 %v817
        %v1010 = vunpack.c.l.b16 %v818
        %v1011 = vunpack.c.l.b16 %v819
        %v1012 = vunpack.c.l.b16 %v820
        %v1013 = vunpack.c.l.b16 %v821
        %v1014 = vunpack.c.l.b16 %v822
        %v1015 = vunpack.c.l.b16 %v823
        %v1016 = vunpack.c.l.b16 %v824
        %v1017 = vunpack.c.l.b16 %v825
        %v1018 = vunpack.c.l.b16 %v826
        %v1019 = vunpack.c.l.b16 %v827
        %v1020 = vunpack.c.l.b16 %v828
        %v1021 = vunpack.c.l.b16 %v829
        %v1022 = vpack.c.b16 %v999, %v998
        %v1023 = vpack.c.b16 %v1001, %v1000
        %v1024 = vpack.c.b16 %v1003, %v1002
        %v1025 = vpack.c.b16 %v1005, %v1004
        %v1026 = vpack.c.b16 %v1007, %v1006
        %v1027 = vpack.c.b16 %v1009, %v1008
        %v1028 = vpack.c.b16 %v1011, %v1010
        %v1029 = vpack.c.b16 %v1013, %v1012
        %v1030 = vpack.c.b16 %v1015, %v1014
        %v1031 = vpack.c.b16 %v1017, %v1016
        %v1032 = vpack.c.b16 %v1019, %v1018
        %v1033 = vpack.c.b16 %v1021, %v1020
        %v1047 = vsel %vm482, %v927, 0
        %v1050 = vsel %vm482, %v929, 0
        %v1053 = vsel %vm482, %v931, 0
        %v1056 = vsel %vm482, %v933, 0
        %v1059 = vsel %vm482, %v935, 0
        %v1062 = vsel %vm482, %v937, 0
        %v1065 = vsel %vm482, %v939, 0
        %v1068 = vsel %vm482, %v941, 0
        %v1071 = vsel %vm482, %v943, 0
        %v1074 = vsel %vm482, %v945, 0
        %v1077 = vsel %vm482, %v947, 0
        %v1080 = vsel %vm482, %v949, 0
        %v1083 = vsel %vm482, %v951, 0
        %v1086 = vsel %vm482, %v953, 0
        %v1089 = vsel %vm482, %v955, 0
        %v1092 = vsel %vm482, %v957, 0
        %1094 = vmatpush.bf16.msra.mxu0 %v1029
        %1095 = vmatpush.bf16.msra.mxu0 %v1028
        %1096 = vmatpush.bf16.msra.mxu0 %v1027
        %1097 = vmatpush.bf16.msra.mxu0 %v1026
        %1098 = vmatpush.bf16.msra.mxu0 %v1025
        %1099 = vmatpush.bf16.msra.mxu0 %v1024
        %1100 = vmatpush.bf16.msra.mxu0 %v1023
        %1101 = vmatpush.bf16.msra.mxu0 %v1022
        %1102 = vmatmul.bf16.gmra.mxu0 %v926
        %v1103 = vpop.f32.mrf.mxu0
        %v1104 = vadd.f32 0.0, %v1103
        %v1105 = vpop.f32.mrf.mxu0
        %v1106 = vadd.f32 0.0, %v1105
        %1107 = vmatmul.bf16.gmra.mxu0 %v928
        %v1108 = vpop.f32.mrf.mxu0
        %v1109 = vadd.f32 0.0, %v1108
        %v1110 = vpop.f32.mrf.mxu0
        %v1111 = vadd.f32 0.0, %v1110
        %1112 = vmatmul.bf16.gmra.mxu0 %v930
        %v1113 = vpop.f32.mrf.mxu0
        %v1114 = vadd.f32 0.0, %v1113
        %v1115 = vpop.f32.mrf.mxu0
        %v1116 = vadd.f32 0.0, %v1115
        %1117 = vmatmul.bf16.gmra.mxu0 %v932
        %v1118 = vpop.f32.mrf.mxu0
        %v1119 = vadd.f32 0.0, %v1118
        %v1120 = vpop.f32.mrf.mxu0
        %v1121 = vadd.f32 0.0, %v1120
        %1122 = vmatmul.bf16.gmra.mxu0 %v934
        %v1123 = vpop.f32.mrf.mxu0
        %v1124 = vadd.f32 0.0, %v1123
        %v1125 = vpop.f32.mrf.mxu0
        %v1126 = vadd.f32 0.0, %v1125
        %1127 = vmatmul.bf16.gmra.mxu0 %v936
        %v1128 = vpop.f32.mrf.mxu0
        %v1129 = vadd.f32 0.0, %v1128
        %v1130 = vpop.f32.mrf.mxu0
        %v1131 = vadd.f32 0.0, %v1130
        %1132 = vmatmul.bf16.gmra.mxu0 %v938
        %v1133 = vpop.f32.mrf.mxu0
        %v1134 = vadd.f32 0.0, %v1133
        %v1135 = vpop.f32.mrf.mxu0
        %v1136 = vadd.f32 0.0, %v1135
        %1137 = vmatmul.bf16.gmra.mxu0 %v940
        %v1138 = vpop.f32.mrf.mxu0
        %v1139 = vadd.f32 0.0, %v1138
        %v1140 = vpop.f32.mrf.mxu0
        %v1141 = vadd.f32 0.0, %v1140
        %1142 = vmatmul.bf16.gmra.mxu0 %v942
        %v1143 = vpop.f32.mrf.mxu0
        %v1144 = vadd.f32 0.0, %v1143
        %v1145 = vpop.f32.mrf.mxu0
        %v1146 = vadd.f32 0.0, %v1145
        %1147 = vmatmul.bf16.gmra.mxu0 %v944
        %v1148 = vpop.f32.mrf.mxu0
        %v1149 = vadd.f32 0.0, %v1148
        %v1150 = vpop.f32.mrf.mxu0
        %v1151 = vadd.f32 0.0, %v1150
        %1152 = vmatmul.bf16.gmra.mxu0 %v946
        %v1153 = vpop.f32.mrf.mxu0
        %v1154 = vadd.f32 0.0, %v1153
        %v1155 = vpop.f32.mrf.mxu0
        %v1156 = vadd.f32 0.0, %v1155
        %1157 = vmatmul.bf16.gmra.mxu0 %v948
        %v1158 = vpop.f32.mrf.mxu0
        %v1159 = vadd.f32 0.0, %v1158
        %v1160 = vpop.f32.mrf.mxu0
        %v1161 = vadd.f32 0.0, %v1160
        %1162 = vmatmul.bf16.gmra.mxu0 %v950
        %v1163 = vpop.f32.mrf.mxu0
        %v1164 = vadd.f32 0.0, %v1163
        %v1165 = vpop.f32.mrf.mxu0
        %v1166 = vadd.f32 0.0, %v1165
        %1167 = vmatmul.bf16.gmra.mxu0 %v952
        %v1168 = vpop.f32.mrf.mxu0
        %v1169 = vadd.f32 0.0, %v1168
        %v1170 = vpop.f32.mrf.mxu0
        %v1171 = vadd.f32 0.0, %v1170
        %1172 = vmatmul.bf16.gmra.mxu0 %v954
        %v1173 = vpop.f32.mrf.mxu0
        %v1174 = vadd.f32 0.0, %v1173
        %v1175 = vpop.f32.mrf.mxu0
        %v1176 = vadd.f32 0.0, %v1175
        %1177 = vmatmul.bf16.gmra.mxu0 %v956
        %v1178 = vpop.f32.mrf.mxu0
        %v1179 = vadd.f32 0.0, %v1178
        %v1180 = vpop.f32.mrf.mxu0
        %v1181 = vadd.f32 0.0, %v1180
        %1182 = vdwg.mxu0
        %1183 = vmatpush.bf16.msra.mxu0 0
        %1184 = vmatpush.bf16.msra.mxu0 0
        %1185 = vmatpush.bf16.msra.mxu0 0
        %1186 = vmatpush.bf16.msra.mxu0 0
        %1187 = vmatpush.bf16.msra.mxu0 %v1033
        %1188 = vmatpush.bf16.msra.mxu0 %v1032
        %1189 = vmatpush.bf16.msra.mxu0 %v1031
        %1190 = vmatpush.bf16.msra.mxu0 %v1030
        %1191 = vmatmul.bf16.gmra.mxu0 %v1047
        %v1192 = vpop.f32.mrf.mxu0
        %v1193 = vadd.f32 %v1104, %v1192
        %v1194 = vpop.f32.mrf.mxu0
        %v1195 = vadd.f32 %v1106, %v1194
        %1196 = vmatmul.bf16.gmra.mxu0 %v1050
        %v1197 = vpop.f32.mrf.mxu0
        %v1198 = vadd.f32 %v1109, %v1197
        %v1199 = vpop.f32.mrf.mxu0
        %v1200 = vadd.f32 %v1111, %v1199
        %1201 = vmatmul.bf16.gmra.mxu0 %v1053
        %v1202 = vpop.f32.mrf.mxu0
        %v1203 = vadd.f32 %v1114, %v1202
        %v1204 = vpop.f32.mrf.mxu0
        %v1205 = vadd.f32 %v1116, %v1204
        %1206 = vmatmul.bf16.gmra.mxu0 %v1056
        %v1207 = vpop.f32.mrf.mxu0
        %v1208 = vadd.f32 %v1119, %v1207
        %v1209 = vpop.f32.mrf.mxu0
        %v1210 = vadd.f32 %v1121, %v1209
        %1211 = vmatmul.bf16.gmra.mxu0 %v1059
        %v1212 = vpop.f32.mrf.mxu0
        %v1213 = vadd.f32 %v1124, %v1212
        %v1214 = vpop.f32.mrf.mxu0
        %v1215 = vadd.f32 %v1126, %v1214
        %1216 = vmatmul.bf16.gmra.mxu0 %v1062
        %v1217 = vpop.f32.mrf.mxu0
        %v1218 = vadd.f32 %v1129, %v1217
        %v1219 = vpop.f32.mrf.mxu0
        %v1220 = vadd.f32 %v1131, %v1219
        %1221 = vmatmul.bf16.gmra.mxu0 %v1065
        %v1222 = vpop.f32.mrf.mxu0
        %v1223 = vadd.f32 %v1134, %v1222
        %v1224 = vpop.f32.mrf.mxu0
        %v1225 = vadd.f32 %v1136, %v1224
        %1226 = vmatmul.bf16.gmra.mxu0 %v1068
        %v1227 = vpop.f32.mrf.mxu0
        %v1228 = vadd.f32 %v1139, %v1227
        %v1229 = vpop.f32.mrf.mxu0
        %v1230 = vadd.f32 %v1141, %v1229
        %1231 = vmatmul.bf16.gmra.mxu0 %v1071
        %v1232 = vpop.f32.mrf.mxu0
        %v1233 = vadd.f32 %v1144, %v1232
        %v1234 = vpop.f32.mrf.mxu0
        %v1235 = vadd.f32 %v1146, %v1234
        %1236 = vmatmul.bf16.gmra.mxu0 %v1074
        %v1237 = vpop.f32.mrf.mxu0
        %v1238 = vadd.f32 %v1149, %v1237
        %v1239 = vpop.f32.mrf.mxu0
        %v1240 = vadd.f32 %v1151, %v1239
        %1241 = vmatmul.bf16.gmra.mxu0 %v1077
        %v1242 = vpop.f32.mrf.mxu0
        %v1243 = vadd.f32 %v1154, %v1242
        %v1244 = vpop.f32.mrf.mxu0
        %v1245 = vadd.f32 %v1156, %v1244
        %1246 = vmatmul.bf16.gmra.mxu0 %v1080
        %v1247 = vpop.f32.mrf.mxu0
        %v1248 = vadd.f32 %v1159, %v1247
        %v1249 = vpop.f32.mrf.mxu0
        %v1250 = vadd.f32 %v1161, %v1249
        %1251 = vmatmul.bf16.gmra.mxu0 %v1083
        %v1252 = vpop.f32.mrf.mxu0
        %v1253 = vadd.f32 %v1164, %v1252
        %v1254 = vpop.f32.mrf.mxu0
        %v1255 = vadd.f32 %v1166, %v1254
        %1256 = vmatmul.bf16.gmra.mxu0 %v1086
        %v1257 = vpop.f32.mrf.mxu0
        %v1258 = vadd.f32 %v1169, %v1257
        %v1259 = vpop.f32.mrf.mxu0
        %v1260 = vadd.f32 %v1171, %v1259
        %1261 = vmatmul.bf16.gmra.mxu0 %v1089
        %v1262 = vpop.f32.mrf.mxu0
        %v1263 = vadd.f32 %v1174, %v1262
        %v1264 = vpop.f32.mrf.mxu0
        %v1265 = vadd.f32 %v1176, %v1264
        %1266 = vmatmul.bf16.gmra.mxu0 %v1092
        %v1267 = vpop.f32.mrf.mxu0
        %v1268 = vadd.f32 %v1179, %v1267
        %v1269 = vpop.f32.mrf.mxu0
        %v1270 = vadd.f32 %v1181, %v1269
        %1271 = vdwg.mxu0
        %v1272 = vadd.f32 %v741, %v1193
        %v1273 = vadd.f32 %v742, %v1195
        %v1274 = vadd.f32 %v743, %v1198
        %v1275 = vadd.f32 %v744, %v1200
        %v1276 = vadd.f32 %v745, %v1203
        %v1277 = vadd.f32 %v746, %v1205
        %v1278 = vadd.f32 %v747, %v1208
        %v1279 = vadd.f32 %v748, %v1210
        %v1280 = vadd.f32 %v749, %v1213
        %v1281 = vadd.f32 %v750, %v1215
        %v1282 = vadd.f32 %v751, %v1218
        %v1283 = vadd.f32 %v752, %v1220
        %v1284 = vadd.f32 %v753, %v1223
        %v1285 = vadd.f32 %v754, %v1225
        %v1286 = vadd.f32 %v755, %v1228
        %v1287 = vadd.f32 %v756, %v1230
        %v1288 = vadd.f32 %v757, %v1233
        %v1289 = vadd.f32 %v758, %v1235
        %v1290 = vadd.f32 %v759, %v1238
        %v1291 = vadd.f32 %v760, %v1240
        %v1292 = vadd.f32 %v761, %v1243
        %v1293 = vadd.f32 %v762, %v1245
        %v1294 = vadd.f32 %v763, %v1248
        %v1295 = vadd.f32 %v764, %v1250
        %v1296 = vadd.f32 %v765, %v1253
        %v1297 = vadd.f32 %v766, %v1255
        %v1298 = vadd.f32 %v767, %v1258
        %v1299 = vadd.f32 %v768, %v1260
        %v1300 = vadd.f32 %v769, %v1263
        %v1301 = vadd.f32 %v770, %v1265
        %v1302 = vadd.f32 %v771, %v1268
        %v1303 = vadd.f32 %v772, %v1270
        %1304 = vst [vmem:[#allocation2] sm:$0xff] %v1272
        %1305 = vst [vmem:[#allocation2 + $0x8] sm:$0xff] %v1273
        %1306 = vst [vmem:[#allocation2 + $0x10] sm:$0xff] %v1274
        %1307 = vst [vmem:[#allocation2 + $0x18] sm:$0xff] %v1275
        %1308 = vst [vmem:[#allocation2 + $0x20] sm:$0xff] %v1276
        %1309 = vst [vmem:[#allocation2 + $0x28] sm:$0xff] %v1277
        %1310 = vst [vmem:[#allocation2 + $0x30] sm:$0xff] %v1278
        %1311 = vst [vmem:[#allocation2 + $0x38] sm:$0xff] %v1279
        %1312 = vst [vmem:[#allocation2 + $0x40] sm:$0xff] %v1280
        %1313 = vst [vmem:[#allocation2 + $0x48] sm:$0xff] %v1281
        %1314 = vst [vmem:[#allocation2 + $0x50] sm:$0xff] %v1282
        %1315 = vst [vmem:[#allocation2 + $0x58] sm:$0xff] %v1283
        %1316 = vst [vmem:[#allocation2 + $0x60] sm:$0xff] %v1284
        %1317 = vst [vmem:[#allocation2 + $0x68] sm:$0xff] %v1285
        %1318 = vst [vmem:[#allocation2 + $0x70] sm:$0xff] %v1286
        %1319 = vst [vmem:[#allocation2 + $0x78] sm:$0xff] %v1287
        %1320 = vst [vmem:[#allocation2 + $0x80] sm:$0xff] %v1288
        %1321 = vst [vmem:[#allocation2 + $0x88] sm:$0xff] %v1289
        %1322 = vst [vmem:[#allocation2 + $0x90] sm:$0xff] %v1290
        %1323 = vst [vmem:[#allocation2 + $0x98] sm:$0xff] %v1291
        %1324 = vst [vmem:[#allocation2 + $0xa0] sm:$0xff] %v1292
        %1325 = vst [vmem:[#allocation2 + $0xa8] sm:$0xff] %v1293
        %1326 = vst [vmem:[#allocation2 + $0xb0] sm:$0xff] %v1294
        %1327 = vst [vmem:[#allocation2 + $0xb8] sm:$0xff] %v1295
        %1328 = vst [vmem:[#allocation2 + $0xc0] sm:$0xff] %v1296
        %1329 = vst [vmem:[#allocation2 + $0xc8] sm:$0xff] %v1297
        %1330 = vst [vmem:[#allocation2 + $0xd0] sm:$0xff] %v1298
        %1331 = vst [vmem:[#allocation2 + $0xd8] sm:$0xff] %v1299
        %1332 = vst [vmem:[#allocation2 + $0xe0] sm:$0xff] %v1300
        %1333 = vst [vmem:[#allocation2 + $0xe8] sm:$0xff] %v1301
        %1334 = vst [vmem:[#allocation2 + $0xf0] sm:$0xff] %v1302
        %1335 = vst [vmem:[#allocation2 + $0xf8] sm:$0xff] %v1303
        %v1336 = vld [vmem:[#allocation2] sm:$0xff]
        %v1337 = vld [vmem:[#allocation2 + $0x8] sm:$0xff]
        %v1338 = vld [vmem:[#allocation2 + $0x10] sm:$0xff]
        %v1339 = vld [vmem:[#allocation2 + $0x18] sm:$0xff]
        %v1340 = vld [vmem:[#allocation2 + $0x20] sm:$0xff]
        %v1341 = vld [vmem:[#allocation2 + $0x28] sm:$0xff]
        %v1342 = vld [vmem:[#allocation2 + $0x30] sm:$0xff]
        %v1343 = vld [vmem:[#allocation2 + $0x38] sm:$0xff]
        %v1344 = vld [vmem:[#allocation2 + $0x40] sm:$0xff]
        %v1345 = vld [vmem:[#allocation2 + $0x48] sm:$0xff]
        %v1346 = vld [vmem:[#allocation2 + $0x50] sm:$0xff]
        %v1347 = vld [vmem:[#allocation2 + $0x58] sm:$0xff]
        %v1348 = vld [vmem:[#allocation2 + $0x60] sm:$0xff]
        %v1349 = vld [vmem:[#allocation2 + $0x68] sm:$0xff]
        %v1350 = vld [vmem:[#allocation2 + $0x70] sm:$0xff]
        %v1351 = vld [vmem:[#allocation2 + $0x78] sm:$0xff]
        %v1352 = vld [vmem:[#allocation2 + $0x80] sm:$0xff]
        %v1353 = vld [vmem:[#allocation2 + $0x88] sm:$0xff]
        %v1354 = vld [vmem:[#allocation2 + $0x90] sm:$0xff]
        %v1355 = vld [vmem:[#allocation2 + $0x98] sm:$0xff]
        %v1356 = vld [vmem:[#allocation2 + $0xa0] sm:$0xff]
        %v1357 = vld [vmem:[#allocation2 + $0xa8] sm:$0xff]
        %v1358 = vld [vmem:[#allocation2 + $0xb0] sm:$0xff]
        %v1359 = vld [vmem:[#allocation2 + $0xb8] sm:$0xff]
        %v1360 = vld [vmem:[#allocation2 + $0xc0] sm:$0xff]
        %v1361 = vld [vmem:[#allocation2 + $0xc8] sm:$0xff]
        %v1362 = vld [vmem:[#allocation2 + $0xd0] sm:$0xff]
        %v1363 = vld [vmem:[#allocation2 + $0xd8] sm:$0xff]
        %v1364 = vld [vmem:[#allocation2 + $0xe0] sm:$0xff]
        %v1365 = vld [vmem:[#allocation2 + $0xe8] sm:$0xff]
        %v1366 = vld [vmem:[#allocation2 + $0xf0] sm:$0xff]
        %v1367 = vld [vmem:[#allocation2 + $0xf8] sm:$0xff]
        %v1368 = vld [vmem:[%s179 + $0x20] sm:$0xff]
        %v1369 = vld [vmem:[%s179 + $0x28] sm:$0xff]
        %v1370 = vld [vmem:[%s179 + $0x30] sm:$0xff]
        %v1371 = vld [vmem:[%s179 + $0x38] sm:$0xff]
        %v1372 = vld [vmem:[%s179 + $0x40] sm:$0xff]
        %v1373 = vld [vmem:[%s179 + $0x48] sm:$0xff]
        %v1374 = vld [vmem:[%s179 + $0x50] sm:$0xff]
        %v1375 = vld [vmem:[%s179 + $0x58] sm:$0xff]
        %v1376 = vld [vmem:[%s179 + $0x60] sm:$0xff]
        %v1377 = vld [vmem:[%s179 + $0x68] sm:$0xff]
        %v1378 = vld [vmem:[%s179 + $0x70] sm:$0xff]
        %v1379 = vld [vmem:[%s179 + $0x78] sm:$0xff]
        %v1380 = vld [vmem:[%s179 + $0x80] sm:$0xff]
        %v1381 = vld [vmem:[%s179 + $0x88] sm:$0xff]
        %v1382 = vld [vmem:[%s179 + $0x90] sm:$0xff]
        %v1383 = vld [vmem:[%s179 + $0x98] sm:$0xff]
        %v1384 = vld [vmem:[%s179 + $0xa0] sm:$0xff]
        %v1385 = vld [vmem:[%s179 + $0xa8] sm:$0xff]
        %v1386 = vld [vmem:[%s179 + $0xb0] sm:$0xff]
        %v1387 = vld [vmem:[%s179 + $0xb8] sm:$0xff]
        %v1388 = vld [vmem:[%s179 + $0xc0] sm:$0xff]
        %v1389 = vld [vmem:[%s179 + $0xc8] sm:$0xff]
        %v1390 = vld [vmem:[%s179 + $0xd0] sm:$0xff]
        %v1391 = vld [vmem:[%s179 + $0xd8] sm:$0xff]
        %v1392 = vld [vmem:[%s179 + $0xe0] sm:$0xff]
        %v1393 = vld [vmem:[%s179 + $0xe8] sm:$0xff]
        %v1394 = vld [vmem:[%s179 + $0xf0] sm:$0xff]
        %v1395 = vld [vmem:[%s179 + $0xf8] sm:$0xff]
        %v1396 = vld [vmem:[%s179 + $0x100] sm:$0xff]
        %v1397 = vld [vmem:[%s179 + $0x108] sm:$0xff]
        %v1398 = vld [vmem:[%s179 + $0x110] sm:$0xff]
        %v1399 = vld [vmem:[%s179 + $0x118] sm:$0xff]
        %s1400 = scalar_lea.vmem [#allocation6], 192
        %v1401 = vld [vmem:[%s1400] sm:$0xf]
        %v1402 = vld [vmem:[%s1400 + $0x4] sm:$0xf]
        %v1403 = vld [vmem:[%s1400 + $0x8] sm:$0xf]
        %v1404 = vld [vmem:[%s1400 + $0xc] sm:$0xf]
        %v1405 = vld [vmem:[%s1400 + $0x10] sm:$0xf]
        %v1406 = vld [vmem:[%s1400 + $0x14] sm:$0xf]
        %v1407 = vld [vmem:[%s1400 + $0x18] sm:$0xf]
        %v1408 = vld [vmem:[%s1400 + $0x1c] sm:$0xf]
        %v1409 = vld [vmem:[%s1400 + $0x20] sm:$0xf]
        %v1410 = vld [vmem:[%s1400 + $0x24] sm:$0xf]
        %v1411 = vld [vmem:[%s1400 + $0x28] sm:$0xf]
        %v1412 = vld [vmem:[%s1400 + $0x2c] sm:$0xf]
        %v1413 = vld [vmem:[%s1400 + $0x30] sm:$0xf]
        %v1414 = vld [vmem:[%s1400 + $0x34] sm:$0xf]
        %v1415 = vld [vmem:[%s1400 + $0x38] sm:$0xf]
        %v1416 = vld [vmem:[%s1400 + $0x3c] sm:$0xf]
        %v1417 = vld [vmem:[%s1400 + $0x40] sm:$0xf]
        %v1418 = vld [vmem:[%s1400 + $0x44] sm:$0xf]
        %v1419 = vld [vmem:[%s1400 + $0x48] sm:$0xf]
        %v1420 = vld [vmem:[%s1400 + $0x4c] sm:$0xf]
        %v1421 = vld [vmem:[%s1400 + $0x50] sm:$0xf]
        %v1422 = vld [vmem:[%s1400 + $0x54] sm:$0xf]
        %v1423 = vld [vmem:[%s1400 + $0x58] sm:$0xf]
        %v1424 = vld [vmem:[%s1400 + $0x5c] sm:$0xf]
        %v1457 = vunpack.c.l.b16 %v1368
        %v1458 = vunpack.c.h.b16 %v1368
        %v1459 = vunpack.c.l.b16 %v1369
        %v1460 = vunpack.c.h.b16 %v1369
        %v1461 = vunpack.c.l.b16 %v1370
        %v1462 = vunpack.c.h.b16 %v1370
        %v1463 = vunpack.c.l.b16 %v1371
        %v1464 = vunpack.c.h.b16 %v1371
        %v1465 = vunpack.c.l.b16 %v1372
        %v1466 = vunpack.c.h.b16 %v1372
        %v1467 = vunpack.c.l.b16 %v1373
        %v1468 = vunpack.c.h.b16 %v1373
        %v1469 = vunpack.c.l.b16 %v1374
        %v1470 = vunpack.c.h.b16 %v1374
        %v1471 = vunpack.c.l.b16 %v1375
        %v1472 = vunpack.c.h.b16 %v1375
        %v1473 = vunpack.c.l.b16 %v1376
        %v1474 = vunpack.c.h.b16 %v1376
        %v1475 = vunpack.c.l.b16 %v1377
        %v1476 = vunpack.c.h.b16 %v1377
        %v1477 = vunpack.c.l.b16 %v1378
        %v1478 = vunpack.c.h.b16 %v1378
        %v1479 = vunpack.c.l.b16 %v1379
        %v1480 = vunpack.c.h.b16 %v1379
        %v1481 = vunpack.c.l.b16 %v1380
        %v1482 = vunpack.c.h.b16 %v1380
        %v1483 = vunpack.c.l.b16 %v1381
        %v1484 = vunpack.c.h.b16 %v1381
        %v1485 = vunpack.c.l.b16 %v1382
        %v1486 = vunpack.c.h.b16 %v1382
        %v1487 = vunpack.c.l.b16 %v1383
        %v1488 = vunpack.c.h.b16 %v1383
        %v1489 = vunpack.c.l.b16 %v1384
        %v1490 = vunpack.c.h.b16 %v1384
        %v1491 = vunpack.c.l.b16 %v1385
        %v1492 = vunpack.c.h.b16 %v1385
        %v1493 = vunpack.c.l.b16 %v1386
        %v1494 = vunpack.c.h.b16 %v1386
        %v1495 = vunpack.c.l.b16 %v1387
        %v1496 = vunpack.c.h.b16 %v1387
        %v1497 = vunpack.c.l.b16 %v1388
        %v1498 = vunpack.c.h.b16 %v1388
        %v1499 = vunpack.c.l.b16 %v1389
        %v1500 = vunpack.c.h.b16 %v1389
        %v1501 = vunpack.c.l.b16 %v1390
        %v1502 = vunpack.c.h.b16 %v1390
        %v1503 = vunpack.c.l.b16 %v1391
        %v1504 = vunpack.c.h.b16 %v1391
        %v1505 = vunpack.c.l.b16 %v1392
        %v1506 = vunpack.c.h.b16 %v1392
        %v1507 = vunpack.c.l.b16 %v1393
        %v1508 = vunpack.c.h.b16 %v1393
        %v1509 = vunpack.c.l.b16 %v1394
        %v1510 = vunpack.c.h.b16 %v1394
        %v1511 = vunpack.c.l.b16 %v1395
        %v1512 = vunpack.c.h.b16 %v1395
        %v1513 = vunpack.c.l.b16 %v1396
        %v1514 = vunpack.c.h.b16 %v1396
        %v1515 = vunpack.c.l.b16 %v1397
        %v1516 = vunpack.c.h.b16 %v1397
        %v1517 = vunpack.c.l.b16 %v1398
        %v1518 = vunpack.c.h.b16 %v1398
        %v1519 = vunpack.c.l.b16 %v1399
        %v1520 = vunpack.c.h.b16 %v1399
        %v1521 = vpack.c.b16 %v1459, %v1457
        %v1522 = vpack.c.b16 %v1460, %v1458
        %v1523 = vpack.c.b16 %v1463, %v1461
        %v1524 = vpack.c.b16 %v1464, %v1462
        %v1525 = vpack.c.b16 %v1467, %v1465
        %v1526 = vpack.c.b16 %v1468, %v1466
        %v1527 = vpack.c.b16 %v1471, %v1469
        %v1528 = vpack.c.b16 %v1472, %v1470
        %v1529 = vpack.c.b16 %v1475, %v1473
        %v1530 = vpack.c.b16 %v1476, %v1474
        %v1531 = vpack.c.b16 %v1479, %v1477
        %v1532 = vpack.c.b16 %v1480, %v1478
        %v1533 = vpack.c.b16 %v1483, %v1481
        %v1534 = vpack.c.b16 %v1484, %v1482
        %v1535 = vpack.c.b16 %v1487, %v1485
        %v1536 = vpack.c.b16 %v1488, %v1486
        %v1537 = vpack.c.b16 %v1491, %v1489
        %v1538 = vpack.c.b16 %v1492, %v1490
        %v1539 = vpack.c.b16 %v1495, %v1493
        %v1540 = vpack.c.b16 %v1496, %v1494
        %v1541 = vpack.c.b16 %v1499, %v1497
        %v1542 = vpack.c.b16 %v1500, %v1498
        %v1543 = vpack.c.b16 %v1503, %v1501
        %v1544 = vpack.c.b16 %v1504, %v1502
        %v1545 = vpack.c.b16 %v1507, %v1505
        %v1546 = vpack.c.b16 %v1508, %v1506
        %v1547 = vpack.c.b16 %v1511, %v1509
        %v1548 = vpack.c.b16 %v1512, %v1510
        %v1549 = vpack.c.b16 %v1515, %v1513
        %v1550 = vpack.c.b16 %v1516, %v1514
        %v1551 = vpack.c.b16 %v1519, %v1517
        %v1552 = vpack.c.b16 %v1520, %v1518
        %v1593 = vunpack.c.l.b16 %v1401
        %v1594 = vunpack.c.l.b16 %v1402
        %v1595 = vunpack.c.l.b16 %v1403
        %v1596 = vunpack.c.l.b16 %v1404
        %v1597 = vunpack.c.l.b16 %v1405
        %v1598 = vunpack.c.l.b16 %v1406
        %v1599 = vunpack.c.l.b16 %v1407
        %v1600 = vunpack.c.l.b16 %v1408
        %v1601 = vunpack.c.l.b16 %v1409
        %v1602 = vunpack.c.l.b16 %v1410
        %v1603 = vunpack.c.l.b16 %v1411
        %v1604 = vunpack.c.l.b16 %v1412
        %v1605 = vunpack.c.l.b16 %v1413
        %v1606 = vunpack.c.l.b16 %v1414
        %v1607 = vunpack.c.l.b16 %v1415
        %v1608 = vunpack.c.l.b16 %v1416
        %v1609 = vunpack.c.l.b16 %v1417
        %v1610 = vunpack.c.l.b16 %v1418
        %v1611 = vunpack.c.l.b16 %v1419
        %v1612 = vunpack.c.l.b16 %v1420
        %v1613 = vunpack.c.l.b16 %v1421
        %v1614 = vunpack.c.l.b16 %v1422
        %v1615 = vunpack.c.l.b16 %v1423
        %v1616 = vunpack.c.l.b16 %v1424
        %v1617 = vpack.c.b16 %v1594, %v1593
        %v1618 = vpack.c.b16 %v1596, %v1595
        %v1619 = vpack.c.b16 %v1598, %v1597
        %v1620 = vpack.c.b16 %v1600, %v1599
        %v1621 = vpack.c.b16 %v1602, %v1601
        %v1622 = vpack.c.b16 %v1604, %v1603
        %v1623 = vpack.c.b16 %v1606, %v1605
        %v1624 = vpack.c.b16 %v1608, %v1607
        %v1625 = vpack.c.b16 %v1610, %v1609
        %v1626 = vpack.c.b16 %v1612, %v1611
        %v1627 = vpack.c.b16 %v1614, %v1613
        %v1628 = vpack.c.b16 %v1616, %v1615
        %v1642 = vsel %vm482, %v1522, 0
        %v1645 = vsel %vm482, %v1524, 0
        %v1648 = vsel %vm482, %v1526, 0
        %v1651 = vsel %vm482, %v1528, 0
        %v1654 = vsel %vm482, %v1530, 0
        %v1657 = vsel %vm482, %v1532, 0
        %v1660 = vsel %vm482, %v1534, 0
        %v1663 = vsel %vm482, %v1536, 0
        %v1666 = vsel %vm482, %v1538, 0
        %v1669 = vsel %vm482, %v1540, 0
        %v1672 = vsel %vm482, %v1542, 0
        %v1675 = vsel %vm482, %v1544, 0
        %v1678 = vsel %vm482, %v1546, 0
        %v1681 = vsel %vm482, %v1548, 0
        %v1684 = vsel %vm482, %v1550, 0
        %v1687 = vsel %vm482, %v1552, 0
        %1689 = vmatpush.bf16.msra.mxu0 %v1624
        %1690 = vmatpush.bf16.msra.mxu0 %v1623
        %1691 = vmatpush.bf16.msra.mxu0 %v1622
        %1692 = vmatpush.bf16.msra.mxu0 %v1621
        %1693 = vmatpush.bf16.msra.mxu0 %v1620
        %1694 = vmatpush.bf16.msra.mxu0 %v1619
        %1695 = vmatpush.bf16.msra.mxu0 %v1618
        %1696 = vmatpush.bf16.msra.mxu0 %v1617
        %1697 = vmatmul.bf16.gmra.mxu0 %v1521
        %v1698 = vpop.f32.mrf.mxu0
        %v1699 = vadd.f32 0.0, %v1698
        %v1700 = vpop.f32.mrf.mxu0
        %v1701 = vadd.f32 0.0, %v1700
        %1702 = vmatmul.bf16.gmra.mxu0 %v1523
        %v1703 = vpop.f32.mrf.mxu0
        %v1704 = vadd.f32 0.0, %v1703
        %v1705 = vpop.f32.mrf.mxu0
        %v1706 = vadd.f32 0.0, %v1705
        %1707 = vmatmul.bf16.gmra.mxu0 %v1525
        %v1708 = vpop.f32.mrf.mxu0
        %v1709 = vadd.f32 0.0, %v1708
        %v1710 = vpop.f32.mrf.mxu0
        %v1711 = vadd.f32 0.0, %v1710
        %1712 = vmatmul.bf16.gmra.mxu0 %v1527
        %v1713 = vpop.f32.mrf.mxu0
        %v1714 = vadd.f32 0.0, %v1713
        %v1715 = vpop.f32.mrf.mxu0
        %v1716 = vadd.f32 0.0, %v1715
        %1717 = vmatmul.bf16.gmra.mxu0 %v1529
        %v1718 = vpop.f32.mrf.mxu0
        %v1719 = vadd.f32 0.0, %v1718
        %v1720 = vpop.f32.mrf.mxu0
        %v1721 = vadd.f32 0.0, %v1720
        %1722 = vmatmul.bf16.gmra.mxu0 %v1531
        %v1723 = vpop.f32.mrf.mxu0
        %v1724 = vadd.f32 0.0, %v1723
        %v1725 = vpop.f32.mrf.mxu0
        %v1726 = vadd.f32 0.0, %v1725
        %1727 = vmatmul.bf16.gmra.mxu0 %v1533
        %v1728 = vpop.f32.mrf.mxu0
        %v1729 = vadd.f32 0.0, %v1728
        %v1730 = vpop.f32.mrf.mxu0
        %v1731 = vadd.f32 0.0, %v1730
        %1732 = vmatmul.bf16.gmra.mxu0 %v1535
        %v1733 = vpop.f32.mrf.mxu0
        %v1734 = vadd.f32 0.0, %v1733
        %v1735 = vpop.f32.mrf.mxu0
        %v1736 = vadd.f32 0.0, %v1735
        %1737 = vmatmul.bf16.gmra.mxu0 %v1537
        %v1738 = vpop.f32.mrf.mxu0
        %v1739 = vadd.f32 0.0, %v1738
        %v1740 = vpop.f32.mrf.mxu0
        %v1741 = vadd.f32 0.0, %v1740
        %1742 = vmatmul.bf16.gmra.mxu0 %v1539
        %v1743 = vpop.f32.mrf.mxu0
        %v1744 = vadd.f32 0.0, %v1743
        %v1745 = vpop.f32.mrf.mxu0
        %v1746 = vadd.f32 0.0, %v1745
        %1747 = vmatmul.bf16.gmra.mxu0 %v1541
        %v1748 = vpop.f32.mrf.mxu0
        %v1749 = vadd.f32 0.0, %v1748
        %v1750 = vpop.f32.mrf.mxu0
        %v1751 = vadd.f32 0.0, %v1750
        %1752 = vmatmul.bf16.gmra.mxu0 %v1543
        %v1753 = vpop.f32.mrf.mxu0
        %v1754 = vadd.f32 0.0, %v1753
        %v1755 = vpop.f32.mrf.mxu0
        %v1756 = vadd.f32 0.0, %v1755
        %1757 = vmatmul.bf16.gmra.mxu0 %v1545
        %v1758 = vpop.f32.mrf.mxu0
        %v1759 = vadd.f32 0.0, %v1758
        %v1760 = vpop.f32.mrf.mxu0
        %v1761 = vadd.f32 0.0, %v1760
        %1762 = vmatmul.bf16.gmra.mxu0 %v1547
        %v1763 = vpop.f32.mrf.mxu0
        %v1764 = vadd.f32 0.0, %v1763
        %v1765 = vpop.f32.mrf.mxu0
        %v1766 = vadd.f32 0.0, %v1765
        %1767 = vmatmul.bf16.gmra.mxu0 %v1549
        %v1768 = vpop.f32.mrf.mxu0
        %v1769 = vadd.f32 0.0, %v1768
        %v1770 = vpop.f32.mrf.mxu0
        %v1771 = vadd.f32 0.0, %v1770
        %1772 = vmatmul.bf16.gmra.mxu0 %v1551
        %v1773 = vpop.f32.mrf.mxu0
        %v1774 = vadd.f32 0.0, %v1773
        %v1775 = vpop.f32.mrf.mxu0
        %v1776 = vadd.f32 0.0, %v1775
        %1777 = vdwg.mxu0
        %1778 = vmatpush.bf16.msra.mxu0 0
        %1779 = vmatpush.bf16.msra.mxu0 0
        %1780 = vmatpush.bf16.msra.mxu0 0
        %1781 = vmatpush.bf16.msra.mxu0 0
        %1782 = vmatpush.bf16.msra.mxu0 %v1628
        %1783 = vmatpush.bf16.msra.mxu0 %v1627
        %1784 = vmatpush.bf16.msra.mxu0 %v1626
        %1785 = vmatpush.bf16.msra.mxu0 %v1625
        %1786 = vmatmul.bf16.gmra.mxu0 %v1642
        %v1787 = vpop.f32.mrf.mxu0
        %v1788 = vadd.f32 %v1699, %v1787
        %v1789 = vpop.f32.mrf.mxu0
        %v1790 = vadd.f32 %v1701, %v1789
        %1791 = vmatmul.bf16.gmra.mxu0 %v1645
        %v1792 = vpop.f32.mrf.mxu0
        %v1793 = vadd.f32 %v1704, %v1792
        %v1794 = vpop.f32.mrf.mxu0
        %v1795 = vadd.f32 %v1706, %v1794
        %1796 = vmatmul.bf16.gmra.mxu0 %v1648
        %v1797 = vpop.f32.mrf.mxu0
        %v1798 = vadd.f32 %v1709, %v1797
        %v1799 = vpop.f32.mrf.mxu0
        %v1800 = vadd.f32 %v1711, %v1799
        %1801 = vmatmul.bf16.gmra.mxu0 %v1651
        %v1802 = vpop.f32.mrf.mxu0
        %v1803 = vadd.f32 %v1714, %v1802
        %v1804 = vpop.f32.mrf.mxu0
        %v1805 = vadd.f32 %v1716, %v1804
        %1806 = vmatmul.bf16.gmra.mxu0 %v1654
        %v1807 = vpop.f32.mrf.mxu0
        %v1808 = vadd.f32 %v1719, %v1807
        %v1809 = vpop.f32.mrf.mxu0
        %v1810 = vadd.f32 %v1721, %v1809
        %1811 = vmatmul.bf16.gmra.mxu0 %v1657
        %v1812 = vpop.f32.mrf.mxu0
        %v1813 = vadd.f32 %v1724, %v1812
        %v1814 = vpop.f32.mrf.mxu0
        %v1815 = vadd.f32 %v1726, %v1814
        %1816 = vmatmul.bf16.gmra.mxu0 %v1660
        %v1817 = vpop.f32.mrf.mxu0
        %v1818 = vadd.f32 %v1729, %v1817
        %v1819 = vpop.f32.mrf.mxu0
        %v1820 = vadd.f32 %v1731, %v1819
        %1821 = vmatmul.bf16.gmra.mxu0 %v1663
        %v1822 = vpop.f32.mrf.mxu0
        %v1823 = vadd.f32 %v1734, %v1822
        %v1824 = vpop.f32.mrf.mxu0
        %v1825 = vadd.f32 %v1736, %v1824
        %1826 = vmatmul.bf16.gmra.mxu0 %v1666
        %v1827 = vpop.f32.mrf.mxu0
        %v1828 = vadd.f32 %v1739, %v1827
        %v1829 = vpop.f32.mrf.mxu0
        %v1830 = vadd.f32 %v1741, %v1829
        %1831 = vmatmul.bf16.gmra.mxu0 %v1669
        %v1832 = vpop.f32.mrf.mxu0
        %v1833 = vadd.f32 %v1744, %v1832
        %v1834 = vpop.f32.mrf.mxu0
        %v1835 = vadd.f32 %v1746, %v1834
        %1836 = vmatmul.bf16.gmra.mxu0 %v1672
        %v1837 = vpop.f32.mrf.mxu0
        %v1838 = vadd.f32 %v1749, %v1837
        %v1839 = vpop.f32.mrf.mxu0
        %v1840 = vadd.f32 %v1751, %v1839
        %1841 = vmatmul.bf16.gmra.mxu0 %v1675
        %v1842 = vpop.f32.mrf.mxu0
        %v1843 = vadd.f32 %v1754, %v1842
        %v1844 = vpop.f32.mrf.mxu0
        %v1845 = vadd.f32 %v1756, %v1844
        %1846 = vmatmul.bf16.gmra.mxu0 %v1678
        %v1847 = vpop.f32.mrf.mxu0
        %v1848 = vadd.f32 %v1759, %v1847
        %v1849 = vpop.f32.mrf.mxu0
        %v1850 = vadd.f32 %v1761, %v1849
        %1851 = vmatmul.bf16.gmra.mxu0 %v1681
        %v1852 = vpop.f32.mrf.mxu0
        %v1853 = vadd.f32 %v1764, %v1852
        %v1854 = vpop.f32.mrf.mxu0
        %v1855 = vadd.f32 %v1766, %v1854
        %1856 = vmatmul.bf16.gmra.mxu0 %v1684
        %v1857 = vpop.f32.mrf.mxu0
        %v1858 = vadd.f32 %v1769, %v1857
        %v1859 = vpop.f32.mrf.mxu0
        %v1860 = vadd.f32 %v1771, %v1859
        %1861 = vmatmul.bf16.gmra.mxu0 %v1687
        %v1862 = vpop.f32.mrf.mxu0
        %v1863 = vadd.f32 %v1774, %v1862
        %v1864 = vpop.f32.mrf.mxu0
        %v1865 = vadd.f32 %v1776, %v1864
        %1866 = vdwg.mxu0
        %v1867 = vadd.f32 %v1336, %v1788
        %v1868 = vadd.f32 %v1337, %v1790
        %v1869 = vadd.f32 %v1338, %v1793
        %v1870 = vadd.f32 %v1339, %v1795
        %v1871 = vadd.f32 %v1340, %v1798
        %v1872 = vadd.f32 %v1341, %v1800
        %v1873 = vadd.f32 %v1342, %v1803
        %v1874 = vadd.f32 %v1343, %v1805
        %v1875 = vadd.f32 %v1344, %v1808
        %v1876 = vadd.f32 %v1345, %v1810
        %v1877 = vadd.f32 %v1346, %v1813
        %v1878 = vadd.f32 %v1347, %v1815
        %v1879 = vadd.f32 %v1348, %v1818
        %v1880 = vadd.f32 %v1349, %v1820
        %v1881 = vadd.f32 %v1350, %v1823
        %v1882 = vadd.f32 %v1351, %v1825
        %v1883 = vadd.f32 %v1352, %v1828
        %v1884 = vadd.f32 %v1353, %v1830
        %v1885 = vadd.f32 %v1354, %v1833
        %v1886 = vadd.f32 %v1355, %v1835
        %v1887 = vadd.f32 %v1356, %v1838
        %v1888 = vadd.f32 %v1357, %v1840
        %v1889 = vadd.f32 %v1358, %v1843
        %v1890 = vadd.f32 %v1359, %v1845
        %v1891 = vadd.f32 %v1360, %v1848
        %v1892 = vadd.f32 %v1361, %v1850
        %v1893 = vadd.f32 %v1362, %v1853
        %v1894 = vadd.f32 %v1363, %v1855
        %v1895 = vadd.f32 %v1364, %v1858
        %v1896 = vadd.f32 %v1365, %v1860
        %v1897 = vadd.f32 %v1366, %v1863
        %v1898 = vadd.f32 %v1367, %v1865
        %1899 = vst [vmem:[#allocation2] sm:$0xff] %v1867
        %1900 = vst [vmem:[#allocation2 + $0x8] sm:$0xff] %v1868
        %1901 = vst [vmem:[#allocation2 + $0x10] sm:$0xff] %v1869
        %1902 = vst [vmem:[#allocation2 + $0x18] sm:$0xff] %v1870
        %1903 = vst [vmem:[#allocation2 + $0x20] sm:$0xff] %v1871
        %1904 = vst [vmem:[#allocation2 + $0x28] sm:$0xff] %v1872
        %1905 = vst [vmem:[#allocation2 + $0x30] sm:$0xff] %v1873
        %1906 = vst [vmem:[#allocation2 + $0x38] sm:$0xff] %v1874
        %1907 = vst [vmem:[#allocation2 + $0x40] sm:$0xff] %v1875
        %1908 = vst [vmem:[#allocation2 + $0x48] sm:$0xff] %v1876
        %1909 = vst [vmem:[#allocation2 + $0x50] sm:$0xff] %v1877
        %1910 = vst [vmem:[#allocation2 + $0x58] sm:$0xff] %v1878
        %1911 = vst [vmem:[#allocation2 + $0x60] sm:$0xff] %v1879
        %1912 = vst [vmem:[#allocation2 + $0x68] sm:$0xff] %v1880
        %1913 = vst [vmem:[#allocation2 + $0x70] sm:$0xff] %v1881
        %1914 = vst [vmem:[#allocation2 + $0x78] sm:$0xff] %v1882
        %1915 = vst [vmem:[#allocation2 + $0x80] sm:$0xff] %v1883
        %1916 = vst [vmem:[#allocation2 + $0x88] sm:$0xff] %v1884
        %1917 = vst [vmem:[#allocation2 + $0x90] sm:$0xff] %v1885
        %1918 = vst [vmem:[#allocation2 + $0x98] sm:$0xff] %v1886
        %1919 = vst [vmem:[#allocation2 + $0xa0] sm:$0xff] %v1887
        %1920 = vst [vmem:[#allocation2 + $0xa8] sm:$0xff] %v1888
        %1921 = vst [vmem:[#allocation2 + $0xb0] sm:$0xff] %v1889
        %1922 = vst [vmem:[#allocation2 + $0xb8] sm:$0xff] %v1890
        %1923 = vst [vmem:[#allocation2 + $0xc0] sm:$0xff] %v1891
        %1924 = vst [vmem:[#allocation2 + $0xc8] sm:$0xff] %v1892
        %1925 = vst [vmem:[#allocation2 + $0xd0] sm:$0xff] %v1893
        %1926 = vst [vmem:[#allocation2 + $0xd8] sm:$0xff] %v1894
        %1927 = vst [vmem:[#allocation2 + $0xe0] sm:$0xff] %v1895
        %1928 = vst [vmem:[#allocation2 + $0xe8] sm:$0xff] %v1896
        %1929 = vst [vmem:[#allocation2 + $0xf0] sm:$0xff] %v1897
        %1930 = vst [vmem:[#allocation2 + $0xf8] sm:$0xff] %v1898
        %v1931 = vld [vmem:[#allocation2] sm:$0xff]
        %v1932 = vld [vmem:[#allocation2 + $0x8] sm:$0xff]
        %v1933 = vld [vmem:[#allocation2 + $0x10] sm:$0xff]
        %v1934 = vld [vmem:[#allocation2 + $0x18] sm:$0xff]
        %v1935 = vld [vmem:[#allocation2 + $0x20] sm:$0xff]
        %v1936 = vld [vmem:[#allocation2 + $0x28] sm:$0xff]
        %v1937 = vld [vmem:[#allocation2 + $0x30] sm:$0xff]
        %v1938 = vld [vmem:[#allocation2 + $0x38] sm:$0xff]
        %v1939 = vld [vmem:[#allocation2 + $0x40] sm:$0xff]
        %v1940 = vld [vmem:[#allocation2 + $0x48] sm:$0xff]
        %v1941 = vld [vmem:[#allocation2 + $0x50] sm:$0xff]
        %v1942 = vld [vmem:[#allocation2 + $0x58] sm:$0xff]
        %v1943 = vld [vmem:[#allocation2 + $0x60] sm:$0xff]
        %v1944 = vld [vmem:[#allocation2 + $0x68] sm:$0xff]
        %v1945 = vld [vmem:[#allocation2 + $0x70] sm:$0xff]
        %v1946 = vld [vmem:[#allocation2 + $0x78] sm:$0xff]
        %v1947 = vld [vmem:[#allocation2 + $0x80] sm:$0xff]
        %v1948 = vld [vmem:[#allocation2 + $0x88] sm:$0xff]
        %v1949 = vld [vmem:[#allocation2 + $0x90] sm:$0xff]
        %v1950 = vld [vmem:[#allocation2 + $0x98] sm:$0xff]
        %v1951 = vld [vmem:[#allocation2 + $0xa0] sm:$0xff]
        %v1952 = vld [vmem:[#allocation2 + $0xa8] sm:$0xff]
        %v1953 = vld [vmem:[#allocation2 + $0xb0] sm:$0xff]
        %v1954 = vld [vmem:[#allocation2 + $0xb8] sm:$0xff]
        %v1955 = vld [vmem:[#allocation2 + $0xc0] sm:$0xff]
        %v1956 = vld [vmem:[#allocation2 + $0xc8] sm:$0xff]
        %v1957 = vld [vmem:[#allocation2 + $0xd0] sm:$0xff]
        %v1958 = vld [vmem:[#allocation2 + $0xd8] sm:$0xff]
        %v1959 = vld [vmem:[#allocation2 + $0xe0] sm:$0xff]
        %v1960 = vld [vmem:[#allocation2 + $0xe8] sm:$0xff]
        %v1961 = vld [vmem:[#allocation2 + $0xf0] sm:$0xff]
        %v1962 = vld [vmem:[#allocation2 + $0xf8] sm:$0xff]
        %v1964 = vperm.slane %v209, 0
        %v1966 = vadd.f32 %v1931, %v1964
        %v1967 = vadd.f32 %v1932, %v1964
        %v1968 = vadd.f32 %v1933, %v1964
        %v1969 = vadd.f32 %v1934, %v1964
        %v1970 = vadd.f32 %v1935, %v1964
        %v1971 = vadd.f32 %v1936, %v1964
        %v1972 = vadd.f32 %v1937, %v1964
        %v1973 = vadd.f32 %v1938, %v1964
        %v1974 = vadd.f32 %v1939, %v1964
        %v1975 = vadd.f32 %v1940, %v1964
        %v1976 = vadd.f32 %v1941, %v1964
        %v1977 = vadd.f32 %v1942, %v1964
        %v1978 = vadd.f32 %v1943, %v1964
        %v1979 = vadd.f32 %v1944, %v1964
        %v1980 = vadd.f32 %v1945, %v1964
        %v1981 = vadd.f32 %v1946, %v1964
        %v1982 = vadd.f32 %v1947, %v1964
        %v1983 = vadd.f32 %v1948, %v1964
        %v1984 = vadd.f32 %v1949, %v1964
        %v1985 = vadd.f32 %v1950, %v1964
        %v1986 = vadd.f32 %v1951, %v1964
        %v1987 = vadd.f32 %v1952, %v1964
        %v1988 = vadd.f32 %v1953, %v1964
        %v1989 = vadd.f32 %v1954, %v1964
        %v1990 = vadd.f32 %v1955, %v1964
        %v1991 = vadd.f32 %v1956, %v1964
        %v1992 = vadd.f32 %v1957, %v1964
        %v1993 = vadd.f32 %v1958, %v1964
        %v1994 = vadd.f32 %v1959, %v1964
        %v1995 = vadd.f32 %v1960, %v1964
        %v1996 = vadd.f32 %v1961, %v1964
        %v1997 = vadd.f32 %v1962, %v1964
        %1998 = vst [vmem:[%s207] sm:$0xff] %v1966
        %1999 = vst [vmem:[%s207 + $0x8] sm:$0xff] %v1967
        %2000 = vst [vmem:[%s207 + $0x10] sm:$0xff] %v1968
        %2001 = vst [vmem:[%s207 + $0x18] sm:$0xff] %v1969
        %2002 = vst [vmem:[%s207 + $0x20] sm:$0xff] %v1970
        %2003 = vst [vmem:[%s207 + $0x28] sm:$0xff] %v1971
        %2004 = vst [vmem:[%s207 + $0x30] sm:$0xff] %v1972
        %2005 = vst [vmem:[%s207 + $0x38] sm:$0xff] %v1973
        %2006 = vst [vmem:[%s207 + $0x40] sm:$0xff] %v1974
        %2007 = vst [vmem:[%s207 + $0x48] sm:$0xff] %v1975
        %2008 = vst [vmem:[%s207 + $0x50] sm:$0xff] %v1976
        %2009 = vst [vmem:[%s207 + $0x58] sm:$0xff] %v1977
        %2010 = vst [vmem:[%s207 + $0x60] sm:$0xff] %v1978
        %2011 = vst [vmem:[%s207 + $0x68] sm:$0xff] %v1979
        %2012 = vst [vmem:[%s207 + $0x70] sm:$0xff] %v1980
        %2013 = vst [vmem:[%s207 + $0x78] sm:$0xff] %v1981
        %2014 = vst [vmem:[%s207 + $0x80] sm:$0xff] %v1982
        %2015 = vst [vmem:[%s207 + $0x88] sm:$0xff] %v1983
        %2016 = vst [vmem:[%s207 + $0x90] sm:$0xff] %v1984
        %2017 = vst [vmem:[%s207 + $0x98] sm:$0xff] %v1985
        %2018 = vst [vmem:[%s207 + $0xa0] sm:$0xff] %v1986
        %2019 = vst [vmem:[%s207 + $0xa8] sm:$0xff] %v1987
        %2020 = vst [vmem:[%s207 + $0xb0] sm:$0xff] %v1988
        %2021 = vst [vmem:[%s207 + $0xb8] sm:$0xff] %v1989
        %2022 = vst [vmem:[%s207 + $0xc0] sm:$0xff] %v1990
        %2023 = vst [vmem:[%s207 + $0xc8] sm:$0xff] %v1991
        %2024 = vst [vmem:[%s207 + $0xd0] sm:$0xff] %v1992
        %2025 = vst [vmem:[%s207 + $0xd8] sm:$0xff] %v1993
        %2026 = vst [vmem:[%s207 + $0xe0] sm:$0xff] %v1994
        %2027 = vst [vmem:[%s207 + $0xe8] sm:$0xff] %v1995
        %2028 = vst [vmem:[%s207 + $0xf0] sm:$0xff] %v1996
        %2029 = vst [vmem:[%s207 + $0xf8] sm:$0xff] %v1997
        %s2030 = sand.u32 %s97, 1
        %s2031 = scalar_lea.sflag [#allocation5], %s2030
        %s2032 = sand.u32 %s97, 1
        %s2033 = smul.addr %s2032, 256
        %s2034 = scalar_lea.vmem [#allocation8], %s2033
        // Predicated region
        $region41: #{tpu_custom_call.1} parent=31 // pred_check
          %p2035 = pneg %p107
        $region42: #{tpu_custom_call.1} parent=31 // pred_check_branch
          %2037 = sbr.rel (%p2035) target = $region44
        $region43: #{tpu_custom_call.1} parent=31 // pred_region
          %2039 = vsyncadd %s2031, 0
          %s2040 = smul.addr %s21, 32
          %s2041 = smul.addr %s2040, 8
          %s2042 = scalar_lea.hbm %s3, %s2041
          %s2043 = sshll.u32 %s2034, 4
          %s2044 = int_to_ptr.vmem [resolvable:$true] %s2043
          %s2045 = sshll.u32 %s2042, 4
          %s2046 = int_to_ptr.hbm [resolvable:$true] %s2045
          %2051 = dma.vmem_to_hbm [thread:$0]  %s2044, 4096, %s2046, %s2031, 128, 128, 8
        $region44: #{tpu_custom_call.1} parent=31 // pred_fallthru
          _
      $region32: #{tpu_custom_call.1} parent=5 // pred_fallthru
        _
      %p2052 = scmp.le.s32.totalorder 2, %s16
      // Predicated region
      $region45: #{tpu_custom_call.1} parent=5 // pred_check
        %p2053 = pneg %p2052
      $region46: #{tpu_custom_call.1} parent=5 // pred_check_branch
        %2055 = sbr.rel (%p2053) target = $region48
      $region47: #{tpu_custom_call.1} parent=5 // pred_region
        %s2056 = ssub.s32 %s16, 2
        // Predicated region
        $region49: #{tpu_custom_call.1} parent=47 // pred_check
          %p2057 = pneg %p113
        $region50: #{tpu_custom_call.1} parent=47 // pred_check_branch
          %2059 = sbr.rel (%p2057) target = $region52
        $region51: #{tpu_custom_call.1} parent=47 // pred_region
          %s2060 = sand.u32 %s98, 1
          %s2061 = scalar_lea.sflag [#allocation5], %s2060
          %s2062 = sand.u32 %s98, 1
          %s2063 = smul.addr %s2062, 256
          %s2064 = scalar_lea.vmem [#allocation8], %s2063
          %2066 = dma.done %s2061, 4096
        $region52: #{tpu_custom_call.1} parent=47 // pred_fallthru
          _
      $region48: #{tpu_custom_call.1} parent=5 // pred_fallthru
        _
    $region6: #{tpu_custom_call.1} parent=1 // loop_footer
      %s20 = sadd.s32 1, %s16
    $region7: #{tpu_custom_call.1} parent=1 // loop_footer_branch
      %15 = sbr.rel target = $region3
    $region8: #{tpu_custom_call.1} parent=1 // loop_exit
      _
    %2067 = vsyncpa [#allocation4], 1
    %s2068 = scalar_lea.sflag [#allocation4], 1
    %2069 = vsyncpa %s2068, 1
    %2070 = vsyncpa [#allocation7], 1
    %2071 = vsyncpa [#allocation5], 1
    %s2072 = scalar_lea.sflag [#allocation5], 1
    %2073 = vsyncpa %s2072, 1

</llo_original>
